<compile_context>
chip_gen: v5e
topology: v5e:2x2
jax: 0.10.0
libtpu: 0.0.40
codegen_flags: <defaults>
</compile_context>

<pallas_src>
import functools

import jax
import jax.numpy as jnp
import numpy as np
from jax.experimental import pallas as pl
from jax.experimental.pallas import tpu as pltpu


def _dcgru_kernel(sup_ref, xg_ref, hg_ref, wxg_ref, whg_ref, wxc_ref, whc_ref,
                  bg_ref, bc_ref, out_ref, *,
                  num_supports, max_diffusion_step, input_dim, num_units):
    """DCGRU cell for one block of batch elements, batch folded into the matmuls.

    Layouts:
      sup_ref : (S, N, N)
      xg_ref  : (N, BB*Din)  node-major "graph" layout (columns are batch-major)
      hg_ref  : (N, BB*U)    node-major "graph" layout
      wx*_ref : (M, Din, out)  wh*_ref : (M, U, out)   (matrix-major weights)
      b*_ref  : (1, out)
      out_ref : (N, BB*U)    node-major (wrapper transposes to (B, N*U))
    """
    u_dim = num_units
    din = input_dim
    n = xg_ref.shape[0]
    bb = xg_ref.shape[1] // din
    num_matrices = num_supports * max_diffusion_step + 1
    rows = bb * n                                # row index = b*N + n (batch-major)

    def to_rows(graph, feat):
        # (N, BB*feat) node-major -> (BB*N, feat) batch-major rows.
        return jnp.concatenate(
            [graph[:, b * feat:(b + 1) * feat] for b in range(bb)], axis=0)

    def to_graph(rows_mat, feat):
        # (BB*N, feat) batch-major rows -> (N, BB*feat) node-major.
        return jnp.concatenate(
            [rows_mat[b * n:(b + 1) * n, :] for b in range(bb)], axis=1)

    def diffusion(x_start):
        """Chebyshev diffusion, faithful to the PyTorch loop: x0 is reassigned
        inside the recurrence and leaks into the next support's first step."""
        feats = [x_start]
        x0 = x_start
        if max_diffusion_step > 0:
            for s in range(num_supports):
                sup = sup_ref[s]                                   # (N, N)
                x1 = jnp.dot(sup, x0, preferred_element_type=jnp.float32)
                feats.append(x1)
                for _ in range(2, max_diffusion_step + 1):
                    x2 = 2.0 * jnp.dot(
                        sup, x1, preferred_element_type=jnp.float32) - x0
                    feats.append(x2)
                    x1, x0 = x2, x1
        return feats                                               # length M

    xg = xg_ref[...]                                               # (N, BB*Din)
    hg = hg_ref[...]                                               # (N, BB*U)
    h_rows = to_rows(hg, u_dim)                                    # (BB*N, U)

    # Diffuse the x block once; it is shared by gate and candidate convolutions.
    x_diff_rows = [to_rows(f, din) for f in diffusion(xg)]         # M x (BB*N, Din)

    def gconv(h_diff_graph, wx_ref, wh_ref, b_ref):
        """sum_m [X_m | H_m] @ W_m, accumulated per diffusion order (no concat
        of the M feature blocks; static weight slices wx_ref[m] / wh_ref[m])."""
        out_dim = wx_ref.shape[2]
        acc = jnp.zeros((rows, out_dim), dtype=jnp.float32)
        for m in range(num_matrices):
            acc = acc + jnp.dot(x_diff_rows[m], wx_ref[m],
                                preferred_element_type=jnp.float32)
            acc = acc + jnp.dot(to_rows(h_diff_graph[m], u_dim), wh_ref[m],
                                preferred_element_type=jnp.float32)
        # Bias broadcast over rows (single add; bias tiles read once per step).
        return acc + b_ref[...]

    # --- gate graph conv: (r, u) = sigmoid(diff([x, h]) @ Wg + bg) ---
    h_diff = diffusion(hg)
    gate = jax.nn.sigmoid(gconv(h_diff, wxg_ref, whg_ref, bg_ref))  # (BB*N, 2U)
    r = gate[:, :u_dim]
    u = gate[:, u_dim:]

    # --- candidate: c = tanh(diff([x, r*h]) @ Wc + bc); x-diffusion reused ---
    rh_rows = r * h_rows
    rh_diff = diffusion(to_graph(rh_rows, u_dim))
    c = jnp.tanh(gconv(rh_diff, wxc_ref, whc_ref, bc_ref))          # (BB*N, U)

    # GRU update.
    new_h = u * h_rows + (1.0 - u) * c                              # (BB*N, U)
    out_ref[...] = to_graph(new_h, u_dim)                           # (N, BB*U)


def dcgru_cell_forward(supports, inputs, state, w_gate, b_gate, w_cand, b_cand,
                       *, num_nodes, input_dim, num_units, max_diffusion_step,
                       batch_block=None):
    """Pallas-backed DCGRUCell.forward.

    Args:
      supports: (S, N, N) dense supports.
      inputs:   (B, N*input_dim)
      state:    (B, N*num_units)
      w_gate:   ((input_dim+num_units)*M, 2*num_units)  (PyTorch row order f*M+m)
      b_gate:   (2*num_units,)
      w_cand:   ((input_dim+num_units)*M, num_units)
      b_cand:   (num_units,)
    Returns: (output, new_state), both (B, N*num_units).
    """
    B = inputs.shape[0]
    S = supports.shape[0]
    N = num_nodes
    U = num_units
    F = input_dim + num_units
    M = S * max_diffusion_step + 1

    if batch_block is None:
        batch_block = B
    BB = batch_block
    assert B % BB == 0, "batch_block must divide batch"
    if BB != B:
        # Sub-batch blocks slice the lane axis of the (N, B*feat) layouts, so the
        # block lane widths must be 128-aligned to satisfy BlockSpec tiling.
        assert (BB * input_dim) % 128 == 0 and (BB * U) % 128 == 0, (
            "batch_block*input_dim and batch_block*num_units must be multiples "
            "of 128 when batch_block < batch")
    num_blocks = B // BB

    f32 = jnp.float32
    # Node-major "graph" layouts: columns are (batch, feature), batch-major.
    xg = inputs.reshape(B, N, input_dim).astype(f32).transpose(1, 0, 2)
    xg = xg.reshape(N, B * input_dim)
    hg = state.reshape(B, N, U).astype(f32).transpose(1, 0, 2).reshape(N, B * U)

    def split_weights(w, out_dim):
        # PyTorch row order is f*M + m with f = [x features | h features].
        w = w.astype(f32).reshape(F, M, out_dim)
        wx = jnp.transpose(w[:input_dim], (1, 0, 2))   # (M, Din, out)
        wh = jnp.transpose(w[input_dim:], (1, 0, 2))   # (M, U,   out)
        return wx, wh

    wxg, whg = split_weights(w_gate, 2 * U)
    wxc, whc = split_weights(w_cand, U)
    bg = b_gate.reshape(1, 2 * U).astype(f32)
    bc = b_cand.reshape(1, U).astype(f32)

    kernel = functools.partial(
        _dcgru_kernel, num_supports=S, max_diffusion_step=max_diffusion_step,
        input_dim=input_dim, num_units=U)

    out_nm = pl.pallas_call(
        kernel,
        out_shape=jax.ShapeDtypeStruct((N, B * U), f32),
        grid=(num_blocks,),
        in_specs=[
            pl.BlockSpec((S, N, N), lambda i: (0, 0, 0)),            # supports
            pl.BlockSpec((N, BB * input_dim), lambda i: (0, i)),     # x (graph)
            pl.BlockSpec((N, BB * U), lambda i: (0, i)),             # h (graph)
            pl.BlockSpec((M, input_dim, 2 * U), lambda i: (0, 0, 0)),  # Wg (x part)
            pl.BlockSpec((M, U, 2 * U), lambda i: (0, 0, 0)),          # Wg (h part)
            pl.BlockSpec((M, input_dim, U), lambda i: (0, 0, 0)),      # Wc (x part)
            pl.BlockSpec((M, U, U), lambda i: (0, 0, 0)),              # Wc (h part)
            pl.BlockSpec((1, 2 * U), lambda i: (0, 0)),                # b_gate
            pl.BlockSpec((1, U), lambda i: (0, 0)),                    # b_cand
        ],
        out_specs=pl.BlockSpec((N, BB * U), lambda i: (0, i)),
        compiler_params=pltpu.CompilerParams(
            dimension_semantics=("parallel",),          # independent batch blocks
            vmem_limit_bytes=48 * 1024 * 1024),
    )(supports.astype(f32), xg, hg, wxg, whg, wxc, whc, bg, bc)

    # (N, B*U) node-major -> (B, N*U) batch-major: free layout plumbing in XLA.
    new_state = out_nm.reshape(N, B, U).transpose(1, 0, 2).reshape(B, N * U)
    return new_state, new_state


def dcgru_cell_reference(supports, inputs, state, w_gate, b_gate, w_cand,
                         b_cand, *, num_nodes, input_dim, num_units,
                         max_diffusion_step):
    """Pure-JAX mirror of the PyTorch forward (incl. the x0-reassignment quirk)."""
    B = inputs.shape[0]
    S = supports.shape[0]
    N = num_nodes
    U = num_units
    F = input_dim + num_units
    M = S * max_diffusion_step + 1

    def dconv(inp, st, w, b, out_dim):
        x_in = inp.reshape(B, N, -1)
        h_in = st.reshape(B, N, -1)
        x0 = jnp.concatenate([x_in, h_in], axis=2)
        xs = [x0]
        if max_diffusion_step > 0:
            for s in range(S):
                sup = supports[s]
                x1 = jnp.einsum('nm,bmf->bnf', sup, x0)
                xs.append(x1)
                for _ in range(2, max_diffusion_step + 1):
                    x2 = 2.0 * jnp.einsum('nm,bmf->bnf', sup, x1) - x0
                    xs.append(x2)
                    x1, x0 = x2, x1          # matches torch: x0 is reassigned
        X = jnp.stack(xs, axis=1)            # (B, M, N, F)
        X = X.transpose(0, 2, 3, 1)          # (B, N, F, M)
        X = X.reshape(B * N, F * M)
        y = X @ w + b
        return y.reshape(B, N * out_dim)

    value = jax.nn.sigmoid(dconv(inputs, state, w_gate, b_gate, 2 * U))
    value = value.reshape(-1, N, 2 * U)
    r = value[..., :U].reshape(-1, N * U)
    u = value[..., U:].reshape(-1, N * U)
    c = jnp.tanh(dconv(inputs, r * state, w_cand, b_cand, U))
    out = u * state + (1.0 - u) * c
    return out, out


if __name__ == "__main__":
    # Small DCGRU config: dual_random_walk -> 2 supports.
    B = 2
    N = 16            # num_nodes
    DIN = 4           # input_dim
    U = 8             # num_units
    K = 2             # max_diffusion_step
    S = 2             # num_supports (dual_random_walk)
    F = DIN + U
    M = S * K + 1

    key = jax.random.PRNGKey(0)
    k_sup, k_x, k_h, k_wg, k_wc = jax.random.split(key, 5)

    # Row-normalized random-walk style supports (dense, deterministic).
    raw = jax.random.uniform(k_sup, (S, N, N), dtype=jnp.float32)
    supports = raw / jnp.sum(raw, axis=-1, keepdims=True)

    inputs = jax.random.normal(k_x, (B, N * DIN), dtype=jnp.float32)
    state = jax.random.normal(k_h, (B, N * U), dtype=jnp.float32)

    # Parameters: xavier_normal_(gain=1.414) for weights, constant 0.0 biases
    # (DCGRUCell builds DiffusionGraphConv with default bias_start=0.0; the
    #  bias_start=1.0 passed at forward time is unused by the reference code).
    def xavier_normal(k, shape, gain=1.414):
        fan_in, fan_out = shape
        std = gain * np.sqrt(2.0 / (fan_in + fan_out))
        return std * jax.random.normal(k, shape, dtype=jnp.float32)

    w_gate = xavier_normal(k_wg, (F * M, 2 * U))
    b_gate = jnp.zeros((2 * U,), dtype=jnp.float32)
    w_cand = xavier_normal(k_wc, (F * M, U))
    b_cand = jnp.zeros((U,), dtype=jnp.float32)

    out, new_state = dcgru_cell_forward(
        supports, inputs, state, w_gate, b_gate, w_cand, b_cand,
        num_nodes=N, input_dim=DIN, num_units=U, max_diffusion_step=K)
    out = jax.block_until_ready(out)

    ref_out, _ = dcgru_cell_reference(
        supports, inputs, state, w_gate, b_gate, w_cand, b_cand,
        num_nodes=N, input_dim=DIN, num_units=U, max_diffusion_step=K)

    np.testing.assert_allclose(np.asarray(out), np.asarray(ref_out),
                               rtol=1e-5, atol=1e-5)
    print("KERNEL_OK")
</pallas_src>

<mosaic_0001>
module attributes {stable_mosaic.version = 11 : i64} {
  func.func @_dcgru_kernel(%arg0: i32, %arg1: memref<2x16x16xf32, #tpu.memory_space<vmem>>, %arg2: memref<16x8xf32, #tpu.memory_space<vmem>>, %arg3: memref<16x16xf32, #tpu.memory_space<vmem>>, %arg4: memref<5x4x16xf32, #tpu.memory_space<vmem>>, %arg5: memref<5x8x16xf32, #tpu.memory_space<vmem>>, %arg6: memref<5x4x8xf32, #tpu.memory_space<vmem>>, %arg7: memref<5x8x8xf32, #tpu.memory_space<vmem>>, %arg8: memref<1x16xf32, #tpu.memory_space<vmem>>, %arg9: memref<1x8xf32, #tpu.memory_space<vmem>>, %arg10: memref<16x16xf32, #tpu.memory_space<vmem>>) attributes {dimension_semantics = [#tpu.dimension_semantics<parallel>], iteration_bounds = array<i64: 1>, scalar_prefetch = 0 : i64, scratch_operands = 0 : i64, tpu.core_type = #tpu.core_type<tc>, window_params = [{pipeline_mode = #tpu.pipeline_mode<synchronous>, transform_indices = @transform_0, window_bounds = array<i64: 2, 16, 16>}, {transform_indices = @transform_1, window_bounds = array<i64: 16, 8>}, {transform_indices = @transform_2, window_bounds = array<i64: 16, 16>}, {pipeline_mode = #tpu.pipeline_mode<synchronous>, transform_indices = @transform_3, window_bounds = array<i64: 5, 4, 16>}, {pipeline_mode = #tpu.pipeline_mode<synchronous>, transform_indices = @transform_4, window_bounds = array<i64: 5, 8, 16>}, {pipeline_mode = #tpu.pipeline_mode<synchronous>, transform_indices = @transform_5, window_bounds = array<i64: 5, 4, 8>}, {pipeline_mode = #tpu.pipeline_mode<synchronous>, transform_indices = @transform_6, window_bounds = array<i64: 5, 8, 8>}, {pipeline_mode = #tpu.pipeline_mode<synchronous>, transform_indices = @transform_7, window_bounds = array<i64: 1, 16>}, {pipeline_mode = #tpu.pipeline_mode<synchronous>, transform_indices = @transform_8, window_bounds = array<i64: 1, 8>}, {transform_indices = @transform_9, window_bounds = array<i64: 16, 16>}]} {
    %c0 = arith.constant 0 : index
    %c0_0 = arith.constant 0 : index
    %0 = vector.load %arg2[%c0, %c0_0] : memref<16x8xf32, #tpu.memory_space<vmem>>, vector<16x8xf32>
    %c0_1 = arith.constant 0 : index
    %c0_2 = arith.constant 0 : index
    %1 = vector.load %arg3[%c0_1, %c0_2] : memref<16x16xf32, #tpu.memory_space<vmem>>, vector<16x16xf32>
    %2 = vector.extract_strided_slice %1 {offsets = [0, 0], sizes = [16, 8], strides = [1, 1]} : vector<16x16xf32> to vector<16x8xf32>
    %3 = vector.extract_strided_slice %1 {offsets = [0, 8], sizes = [16, 8], strides = [1, 1]} : vector<16x16xf32> to vector<16x8xf32>
    %4 = tpu.concatenate %2, %3 in 0 : vector<16x8xf32>, vector<16x8xf32> -> vector<32x8xf32>
    %c0_3 = arith.constant 0 : index
    %c0_4 = arith.constant 0 : index
    %c0_5 = arith.constant 0 : index
    %5 = vector.load %arg1[%c0_3, %c0_4, %c0_5] : memref<2x16x16xf32, #tpu.memory_space<vmem>>, vector<1x16x16xf32>
    %6 = vector.shape_cast %5 : vector<1x16x16xf32> to vector<16x16xf32>
    %cst = arith.constant dense<0.000000e+00> : vector<16x8xf32>
    %7 = tpu.matmul %6, %0, %cst {dimension_numbers = #tpu.dot_dimension_numbers<[1], [0], [0], [1], [0, 0, 1, 1], [], []>} : vector<16x16xf32>, vector<16x8xf32>, vector<16x8xf32> -> vector<16x8xf32>
    %cst_6 = arith.constant dense<0.000000e+00> : vector<16x8xf32>
    %8 = tpu.matmul %6, %7, %cst_6 {dimension_numbers = #tpu.dot_dimension_numbers<[1], [0], [0], [1], [0, 0, 1, 1], [], []>} : vector<16x16xf32>, vector<16x8xf32>, vector<16x8xf32> -> vector<16x8xf32>
    %cst_7 = arith.constant 2.000000e+00 : f32
    %9 = vector.broadcast %cst_7 : f32 to vector<16x8xf32>
    %10 = arith.mulf %9, %8 : vector<16x8xf32>
    %11 = arith.subf %10, %0 : vector<16x8xf32>
    %c1 = arith.constant 1 : index
    %c0_8 = arith.constant 0 : index
    %c0_9 = arith.constant 0 : index
    %12 = vector.load %arg1[%c1, %c0_8, %c0_9] : memref<2x16x16xf32, #tpu.memory_space<vmem>>, vector<1x16x16xf32>
    %13 = vector.shape_cast %12 : vector<1x16x16xf32> to vector<16x16xf32>
    %cst_10 = arith.constant dense<0.000000e+00> : vector<16x8xf32>
    %14 = tpu.matmul %13, %7, %cst_10 {dimension_numbers = #tpu.dot_dimension_numbers<[1], [0], [0], [1], [0, 0, 1, 1], [], []>} : vector<16x16xf32>, vector<16x8xf32>, vector<16x8xf32> -> vector<16x8xf32>
    %cst_11 = arith.constant dense<0.000000e+00> : vector<16x8xf32>
    %15 = tpu.matmul %13, %14, %cst_11 {dimension_numbers = #tpu.dot_dimension_numbers<[1], [0], [0], [1], [0, 0, 1, 1], [], []>} : vector<16x16xf32>, vector<16x8xf32>, vector<16x8xf32> -> vector<16x8xf32>
    %cst_12 = arith.constant 2.000000e+00 : f32
    %16 = vector.broadcast %cst_12 : f32 to vector<16x8xf32>
    %17 = arith.mulf %16, %15 : vector<16x8xf32>
    %18 = arith.subf %17, %7 : vector<16x8xf32>
    %19 = vector.extract_strided_slice %0 {offsets = [0, 0], sizes = [16, 4], strides = [1, 1]} : vector<16x8xf32> to vector<16x4xf32>
    %20 = vector.extract_strided_slice %0 {offsets = [0, 4], sizes = [16, 4], strides = [1, 1]} : vector<16x8xf32> to vector<16x4xf32>
    %21 = tpu.concatenate %19, %20 in 0 : vector<16x4xf32>, vector<16x4xf32> -> vector<32x4xf32>
    %22 = vector.extract_strided_slice %7 {offsets = [0, 0], sizes = [16, 4], strides = [1, 1]} : vector<16x8xf32> to vector<16x4xf32>
    %23 = vector.extract_strided_slice %7 {offsets = [0, 4], sizes = [16, 4], strides = [1, 1]} : vector<16x8xf32> to vector<16x4xf32>
    %24 = tpu.concatenate %22, %23 in 0 : vector<16x4xf32>, vector<16x4xf32> -> vector<32x4xf32>
    %25 = vector.extract_strided_slice %11 {offsets = [0, 0], sizes = [16, 4], strides = [1, 1]} : vector<16x8xf32> to vector<16x4xf32>
    %26 = vector.extract_strided_slice %11 {offsets = [0, 4], sizes = [16, 4], strides = [1, 1]} : vector<16x8xf32> to vector<16x4xf32>
    %27 = tpu.concatenate %25, %26 in 0 : vector<16x4xf32>, vector<16x4xf32> -> vector<32x4xf32>
    %28 = vector.extract_strided_slice %14 {offsets = [0, 0], sizes = [16, 4], strides = [1, 1]} : vector<16x8xf32> to vector<16x4xf32>
    %29 = vector.extract_strided_slice %14 {offsets = [0, 4], sizes = [16, 4], strides = [1, 1]} : vector<16x8xf32> to vector<16x4xf32>
    %30 = tpu.concatenate %28, %29 in 0 : vector<16x4xf32>, vector<16x4xf32> -> vector<32x4xf32>
    %31 = vector.extract_strided_slice %18 {offsets = [0, 0], sizes = [16, 4], strides = [1, 1]} : vector<16x8xf32> to vector<16x4xf32>
    %32 = vector.extract_strided_slice %18 {offsets = [0, 4], sizes = [16, 4], strides = [1, 1]} : vector<16x8xf32> to vector<16x4xf32>
    %33 = tpu.concatenate %31, %32 in 0 : vector<16x4xf32>, vector<16x4xf32> -> vector<32x4xf32>
    %c0_13 = arith.constant 0 : index
    %c0_14 = arith.constant 0 : index
    %c0_15 = arith.constant 0 : index
    %34 = vector.load %arg1[%c0_13, %c0_14, %c0_15] : memref<2x16x16xf32, #tpu.memory_space<vmem>>, vector<1x16x16xf32>
    %35 = vector.shape_cast %34 : vector<1x16x16xf32> to vector<16x16xf32>
    %cst_16 = arith.constant dense<0.000000e+00> : vector<16x16xf32>
    %36 = tpu.matmul %35, %1, %cst_16 {dimension_numbers = #tpu.dot_dimension_numbers<[1], [0], [0], [1], [0, 0, 1, 1], [], []>} : vector<16x16xf32>, vector<16x16xf32>, vector<16x16xf32> -> vector<16x16xf32>
    %cst_17 = arith.constant dense<0.000000e+00> : vector<16x16xf32>
    %37 = tpu.matmul %35, %36, %cst_17 {dimension_numbers = #tpu.dot_dimension_numbers<[1], [0], [0], [1], [0, 0, 1, 1], [], []>} : vector<16x16xf32>, vector<16x16xf32>, vector<16x16xf32> -> vector<16x16xf32>
    %cst_18 = arith.constant 2.000000e+00 : f32
    %38 = vector.broadcast %cst_18 : f32 to vector<16x16xf32>
    %39 = arith.mulf %38, %37 : vector<16x16xf32>
    %40 = arith.subf %39, %1 : vector<16x16xf32>
    %c1_19 = arith.constant 1 : index
    %c0_20 = arith.constant 0 : index
    %c0_21 = arith.constant 0 : index
    %41 = vector.load %arg1[%c1_19, %c0_20, %c0_21] : memref<2x16x16xf32, #tpu.memory_space<vmem>>, vector<1x16x16xf32>
    %42 = vector.shape_cast %41 : vector<1x16x16xf32> to vector<16x16xf32>
    %cst_22 = arith.constant dense<0.000000e+00> : vector<16x16xf32>
    %43 = tpu.matmul %42, %36, %cst_22 {dimension_numbers = #tpu.dot_dimension_numbers<[1], [0], [0], [1], [0, 0, 1, 1], [], []>} : vector<16x16xf32>, vector<16x16xf32>, vector<16x16xf32> -> vector<16x16xf32>
    %cst_23 = arith.constant dense<0.000000e+00> : vector<16x16xf32>
    %44 = tpu.matmul %42, %43, %cst_23 {dimension_numbers = #tpu.dot_dimension_numbers<[1], [0], [0], [1], [0, 0, 1, 1], [], []>} : vector<16x16xf32>, vector<16x16xf32>, vector<16x16xf32> -> vector<16x16xf32>
    %cst_24 = arith.constant 2.000000e+00 : f32
    %45 = vector.broadcast %cst_24 : f32 to vector<16x16xf32>
    %46 = arith.mulf %45, %44 : vector<16x16xf32>
    %47 = arith.subf %46, %36 : vector<16x16xf32>
    %cst_25 = arith.constant 0.000000e+00 : f32
    %48 = vector.broadcast %cst_25 : f32 to vector<32x16xf32>
    %c0_26 = arith.constant 0 : index
    %c0_27 = arith.constant 0 : index
    %c0_28 = arith.constant 0 : index
    %49 = vector.load %arg4[%c0_26, %c0_27, %c0_28] : memref<5x4x16xf32, #tpu.memory_space<vmem>>, vector<1x4x16xf32>
    %50 = vector.shape_cast %49 : vector<1x4x16xf32> to vector<4x16xf32>
    %cst_29 = arith.constant dense<0.000000e+00> : vector<32x16xf32>
    %51 = tpu.matmul %21, %50, %cst_29 {dimension_numbers = #tpu.dot_dimension_numbers<[1], [0], [0], [1], [0, 0, 1, 1], [], []>} : vector<32x4xf32>, vector<4x16xf32>, vector<32x16xf32> -> vector<32x16xf32>
    %52 = arith.addf %48, %51 : vector<32x16xf32>
    %53 = vector.extract_strided_slice %1 {offsets = [0, 0], sizes = [16, 8], strides = [1, 1]} : vector<16x16xf32> to vector<16x8xf32>
    %54 = vector.extract_strided_slice %1 {offsets = [0, 8], sizes = [16, 8], strides = [1, 1]} : vector<16x16xf32> to vector<16x8xf32>
    %55 = tpu.concatenate %53, %54 in 0 : vector<16x8xf32>, vector<16x8xf32> -> vector<32x8xf32>
    %c0_30 = arith.constant 0 : index
    %c0_31 = arith.constant 0 : index
    %c0_32 = arith.constant 0 : index
    %56 = vector.load %arg5[%c0_30, %c0_31, %c0_32] : memref<5x8x16xf32, #tpu.memory_space<vmem>>, vector<1x8x16xf32>
    %57 = vector.shape_cast %56 : vector<1x8x16xf32> to vector<8x16xf32>
    %cst_33 = arith.constant dense<0.000000e+00> : vector<32x16xf32>
    %58 = tpu.matmul %55, %57, %cst_33 {dimension_numbers = #tpu.dot_dimension_numbers<[1], [0], [0], [1], [0, 0, 1, 1], [], []>} : vector<32x8xf32>, vector<8x16xf32>, vector<32x16xf32> -> vector<32x16xf32>
    %59 = arith.addf %52, %58 : vector<32x16xf32>
    %c1_34 = arith.constant 1 : index
    %c0_35 = arith.constant 0 : index
    %c0_36 = arith.constant 0 : index
    %60 = vector.load %arg4[%c1_34, %c0_35, %c0_36] : memref<5x4x16xf32, #tpu.memory_space<vmem>>, vector<1x4x16xf32>
    %61 = vector.shape_cast %60 : vector<1x4x16xf32> to vector<4x16xf32>
    %cst_37 = arith.constant dense<0.000000e+00> : vector<32x16xf32>
    %62 = tpu.matmul %24, %61, %cst_37 {dimension_numbers = #tpu.dot_dimension_numbers<[1], [0], [0], [1], [0, 0, 1, 1], [], []>} : vector<32x4xf32>, vector<4x16xf32>, vector<32x16xf32> -> vector<32x16xf32>
    %63 = arith.addf %59, %62 : vector<32x16xf32>
    %64 = vector.extract_strided_slice %36 {offsets = [0, 0], sizes = [16, 8], strides = [1, 1]} : vector<16x16xf32> to vector<16x8xf32>
    %65 = vector.extract_strided_slice %36 {offsets = [0, 8], sizes = [16, 8], strides = [1, 1]} : vector<16x16xf32> to vector<16x8xf32>
    %66 = tpu.concatenate %64, %65 in 0 : vector<16x8xf32>, vector<16x8xf32> -> vector<32x8xf32>
    %c1_38 = arith.constant 1 : index
    %c0_39 = arith.constant 0 : index
    %c0_40 = arith.constant 0 : index
    %67 = vector.load %arg5[%c1_38, %c0_39, %c0_40] : memref<5x8x16xf32, #tpu.memory_space<vmem>>, vector<1x8x16xf32>
    %68 = vector.shape_cast %67 : vector<1x8x16xf32> to vector<8x16xf32>
    %cst_41 = arith.constant dense<0.000000e+00> : vector<32x16xf32>
    %69 = tpu.matmul %66, %68, %cst_41 {dimension_numbers = #tpu.dot_dimension_numbers<[1], [0], [0], [1], [0, 0, 1, 1], [], []>} : vector<32x8xf32>, vector<8x16xf32>, vector<32x16xf32> -> vector<32x16xf32>
    %70 = arith.addf %63, %69 : vector<32x16xf32>
    %c2 = arith.constant 2 : index
    %c0_42 = arith.constant 0 : index
    %c0_43 = arith.constant 0 : index
    %71 = vector.load %arg4[%c2, %c0_42, %c0_43] : memref<5x4x16xf32, #tpu.memory_space<vmem>>, vector<1x4x16xf32>
    %72 = vector.shape_cast %71 : vector<1x4x16xf32> to vector<4x16xf32>
    %cst_44 = arith.constant dense<0.000000e+00> : vector<32x16xf32>
    %73 = tpu.matmul %27, %72, %cst_44 {dimension_numbers = #tpu.dot_dimension_numbers<[1], [0], [0], [1], [0, 0, 1, 1], [], []>} : vector<32x4xf32>, vector<4x16xf32>, vector<32x16xf32> -> vector<32x16xf32>
    %74 = arith.addf %70, %73 : vector<32x16xf32>
    %75 = vector.extract_strided_slice %40 {offsets = [0, 0], sizes = [16, 8], strides = [1, 1]} : vector<16x16xf32> to vector<16x8xf32>
    %76 = vector.extract_strided_slice %40 {offsets = [0, 8], sizes = [16, 8], strides = [1, 1]} : vector<16x16xf32> to vector<16x8xf32>
    %77 = tpu.concatenate %75, %76 in 0 : vector<16x8xf32>, vector<16x8xf32> -> vector<32x8xf32>
    %c2_45 = arith.constant 2 : index
    %c0_46 = arith.constant 0 : index
    %c0_47 = arith.constant 0 : index
    %78 = vector.load %arg5[%c2_45, %c0_46, %c0_47] : memref<5x8x16xf32, #tpu.memory_space<vmem>>, vector<1x8x16xf32>
    %79 = vector.shape_cast %78 : vector<1x8x16xf32> to vector<8x16xf32>
    %cst_48 = arith.constant dense<0.000000e+00> : vector<32x16xf32>
    %80 = tpu.matmul %77, %79, %cst_48 {dimension_numbers = #tpu.dot_dimension_numbers<[1], [0], [0], [1], [0, 0, 1, 1], [], []>} : vector<32x8xf32>, vector<8x16xf32>, vector<32x16xf32> -> vector<32x16xf32>
    %81 = arith.addf %74, %80 : vector<32x16xf32>
    %c3 = arith.constant 3 : index
    %c0_49 = arith.constant 0 : index
    %c0_50 = arith.constant 0 : index
    %82 = vector.load %arg4[%c3, %c0_49, %c0_50] : memref<5x4x16xf32, #tpu.memory_space<vmem>>, vector<1x4x16xf32>
    %83 = vector.shape_cast %82 : vector<1x4x16xf32> to vector<4x16xf32>
    %cst_51 = arith.constant dense<0.000000e+00> : vector<32x16xf32>
    %84 = tpu.matmul %30, %83, %cst_51 {dimension_numbers = #tpu.dot_dimension_numbers<[1], [0], [0], [1], [0, 0, 1, 1], [], []>} : vector<32x4xf32>, vector<4x16xf32>, vector<32x16xf32> -> vector<32x16xf32>
    %85 = arith.addf %81, %84 : vector<32x16xf32>
    %86 = vector.extract_strided_slice %43 {offsets = [0, 0], sizes = [16, 8], strides = [1, 1]} : vector<16x16xf32> to vector<16x8xf32>
    %87 = vector.extract_strided_slice %43 {offsets = [0, 8], sizes = [16, 8], strides = [1, 1]} : vector<16x16xf32> to vector<16x8xf32>
    %88 = tpu.concatenate %86, %87 in 0 : vector<16x8xf32>, vector<16x8xf32> -> vector<32x8xf32>
    %c3_52 = arith.constant 3 : index
    %c0_53 = arith.constant 0 : index
    %c0_54 = arith.constant 0 : index
    %89 = vector.load %arg5[%c3_52, %c0_53, %c0_54] : memref<5x8x16xf32, #tpu.memory_space<vmem>>, vector<1x8x16xf32>
    %90 = vector.shape_cast %89 : vector<1x8x16xf32> to vector<8x16xf32>
    %cst_55 = arith.constant dense<0.000000e+00> : vector<32x16xf32>
    %91 = tpu.matmul %88, %90, %cst_55 {dimension_numbers = #tpu.dot_dimension_numbers<[1], [0], [0], [1], [0, 0, 1, 1], [], []>} : vector<32x8xf32>, vector<8x16xf32>, vector<32x16xf32> -> vector<32x16xf32>
    %92 = arith.addf %85, %91 : vector<32x16xf32>
    %c4 = arith.constant 4 : index
    %c0_56 = arith.constant 0 : index
    %c0_57 = arith.constant 0 : index
    %93 = vector.load %arg4[%c4, %c0_56, %c0_57] : memref<5x4x16xf32, #tpu.memory_space<vmem>>, vector<1x4x16xf32>
    %94 = vector.shape_cast %93 : vector<1x4x16xf32> to vector<4x16xf32>
    %cst_58 = arith.constant dense<0.000000e+00> : vector<32x16xf32>
    %95 = tpu.matmul %33, %94, %cst_58 {dimension_numbers = #tpu.dot_dimension_numbers<[1], [0], [0], [1], [0, 0, 1, 1], [], []>} : vector<32x4xf32>, vector<4x16xf32>, vector<32x16xf32> -> vector<32x16xf32>
    %96 = arith.addf %92, %95 : vector<32x16xf32>
    %97 = vector.extract_strided_slice %47 {offsets = [0, 0], sizes = [16, 8], strides = [1, 1]} : vector<16x16xf32> to vector<16x8xf32>
    %98 = vector.extract_strided_slice %47 {offsets = [0, 8], sizes = [16, 8], strides = [1, 1]} : vector<16x16xf32> to vector<16x8xf32>
    %99 = tpu.concatenate %97, %98 in 0 : vector<16x8xf32>, vector<16x8xf32> -> vector<32x8xf32>
    %c4_59 = arith.constant 4 : index
    %c0_60 = arith.constant 0 : index
    %c0_61 = arith.constant 0 : index
    %100 = vector.load %arg5[%c4_59, %c0_60, %c0_61] : memref<5x8x16xf32, #tpu.memory_space<vmem>>, vector<1x8x16xf32>
    %101 = vector.shape_cast %100 : vector<1x8x16xf32> to vector<8x16xf32>
    %cst_62 = arith.constant dense<0.000000e+00> : vector<32x16xf32>
    %102 = tpu.matmul %99, %101, %cst_62 {dimension_numbers = #tpu.dot_dimension_numbers<[1], [0], [0], [1], [0, 0, 1, 1], [], []>} : vector<32x8xf32>, vector<8x16xf32>, vector<32x16xf32> -> vector<32x16xf32>
    %103 = arith.addf %96, %102 : vector<32x16xf32>
    %c0_63 = arith.constant 0 : index
    %c0_64 = arith.constant 0 : index
    %104 = vector.load %arg8[%c0_63, %c0_64] : memref<1x16xf32, #tpu.memory_space<vmem>>, vector<1x16xf32>
    %105 = vector.broadcast %104 : vector<1x16xf32> to vector<32x16xf32>
    %106 = arith.addf %103, %105 : vector<32x16xf32>
    %107 = arith.negf %106 : vector<32x16xf32>
    %108 = math.exp %107 : vector<32x16xf32>
    %cst_65 = arith.constant 1.000000e+00 : f32
    %109 = vector.broadcast %cst_65 : f32 to vector<32x16xf32>
    %110 = arith.addf %109, %108 : vector<32x16xf32>
    %111 = arith.divf %109, %110 : vector<32x16xf32>
    %112 = vector.extract_strided_slice %111 {offsets = [0, 0], sizes = [32, 8], strides = [1, 1]} : vector<32x16xf32> to vector<32x8xf32>
    %113 = vector.extract_strided_slice %111 {offsets = [0, 8], sizes = [32, 8], strides = [1, 1]} : vector<32x16xf32> to vector<32x8xf32>
    %114 = arith.mulf %112, %4 : vector<32x8xf32>
    %115 = vector.extract_strided_slice %114 {offsets = [0, 0], sizes = [16, 8], strides = [1, 1]} : vector<32x8xf32> to vector<16x8xf32>
    %116 = vector.extract_strided_slice %114 {offsets = [16, 0], sizes = [16, 8], strides = [1, 1]} : vector<32x8xf32> to vector<16x8xf32>
    %117 = tpu.concatenate %115, %116 in 1 : vector<16x8xf32>, vector<16x8xf32> -> vector<16x16xf32>
    %c0_66 = arith.constant 0 : index
    %c0_67 = arith.constant 0 : index
    %c0_68 = arith.constant 0 : index
    %118 = vector.load %arg1[%c0_66, %c0_67, %c0_68] : memref<2x16x16xf32, #tpu.memory_space<vmem>>, vector<1x16x16xf32>
    %119 = vector.shape_cast %118 : vector<1x16x16xf32> to vector<16x16xf32>
    %cst_69 = arith.constant dense<0.000000e+00> : vector<16x16xf32>
    %120 = tpu.matmul %119, %117, %cst_69 {dimension_numbers = #tpu.dot_dimension_numbers<[1], [0], [0], [1], [0, 0, 1, 1], [], []>} : vector<16x16xf32>, vector<16x16xf32>, vector<16x16xf32> -> vector<16x16xf32>
    %cst_70 = arith.constant dense<0.000000e+00> : vector<16x16xf32>
    %121 = tpu.matmul %119, %120, %cst_70 {dimension_numbers = #tpu.dot_dimension_numbers<[1], [0], [0], [1], [0, 0, 1, 1], [], []>} : vector<16x16xf32>, vector<16x16xf32>, vector<16x16xf32> -> vector<16x16xf32>
    %cst_71 = arith.constant 2.000000e+00 : f32
    %122 = vector.broadcast %cst_71 : f32 to vector<16x16xf32>
    %123 = arith.mulf %122, %121 : vector<16x16xf32>
    %124 = arith.subf %123, %117 : vector<16x16xf32>
    %c1_72 = arith.constant 1 : index
    %c0_73 = arith.constant 0 : index
    %c0_74 = arith.constant 0 : index
    %125 = vector.load %arg1[%c1_72, %c0_73, %c0_74] : memref<2x16x16xf32, #tpu.memory_space<vmem>>, vector<1x16x16xf32>
    %126 = vector.shape_cast %125 : vector<1x16x16xf32> to vector<16x16xf32>
    %cst_75 = arith.constant dense<0.000000e+00> : vector<16x16xf32>
    %127 = tpu.matmul %126, %120, %cst_75 {dimension_numbers = #tpu.dot_dimension_numbers<[1], [0], [0], [1], [0, 0, 1, 1], [], []>} : vector<16x16xf32>, vector<16x16xf32>, vector<16x16xf32> -> vector<16x16xf32>
    %cst_76 = arith.constant dense<0.000000e+00> : vector<16x16xf32>
    %128 = tpu.matmul %126, %127, %cst_76 {dimension_numbers = #tpu.dot_dimension_numbers<[1], [0], [0], [1], [0, 0, 1, 1], [], []>} : vector<16x16xf32>, vector<16x16xf32>, vector<16x16xf32> -> vector<16x16xf32>
    %cst_77 = arith.constant 2.000000e+00 : f32
    %129 = vector.broadcast %cst_77 : f32 to vector<16x16xf32>
    %130 = arith.mulf %129, %128 : vector<16x16xf32>
    %131 = arith.subf %130, %120 : vector<16x16xf32>
    %cst_78 = arith.constant 0.000000e+00 : f32
    %132 = vector.broadcast %cst_78 : f32 to vector<32x8xf32>
    %c0_79 = arith.constant 0 : index
    %c0_80 = arith.constant 0 : index
    %c0_81 = arith.constant 0 : index
    %133 = vector.load %arg6[%c0_79, %c0_80, %c0_81] : memref<5x4x8xf32, #tpu.memory_space<vmem>>, vector<1x4x8xf32>
    %134 = vector.shape_cast %133 : vector<1x4x8xf32> to vector<4x8xf32>
    %cst_82 = arith.constant dense<0.000000e+00> : vector<32x8xf32>
    %135 = tpu.matmul %21, %134, %cst_82 {dimension_numbers = #tpu.dot_dimension_numbers<[1], [0], [0], [1], [0, 0, 1, 1], [], []>} : vector<32x4xf32>, vector<4x8xf32>, vector<32x8xf32> -> vector<32x8xf32>
    %136 = arith.addf %132, %135 : vector<32x8xf32>
    %137 = vector.extract_strided_slice %117 {offsets = [0, 0], sizes = [16, 8], strides = [1, 1]} : vector<16x16xf32> to vector<16x8xf32>
    %138 = vector.extract_strided_slice %117 {offsets = [0, 8], sizes = [16, 8], strides = [1, 1]} : vector<16x16xf32> to vector<16x8xf32>
    %139 = tpu.concatenate %137, %138 in 0 : vector<16x8xf32>, vector<16x8xf32> -> vector<32x8xf32>
    %c0_83 = arith.constant 0 : index
    %c0_84 = arith.constant 0 : index
    %c0_85 = arith.constant 0 : index
    %140 = vector.load %arg7[%c0_83, %c0_84, %c0_85] : memref<5x8x8xf32, #tpu.memory_space<vmem>>, vector<1x8x8xf32>
    %141 = vector.shape_cast %140 : vector<1x8x8xf32> to vector<8x8xf32>
    %cst_86 = arith.constant dense<0.000000e+00> : vector<32x8xf32>
    %142 = tpu.matmul %139, %141, %cst_86 {dimension_numbers = #tpu.dot_dimension_numbers<[1], [0], [0], [1], [0, 0, 1, 1], [], []>} : vector<32x8xf32>, vector<8x8xf32>, vector<32x8xf32> -> vector<32x8xf32>
    %143 = arith.addf %136, %142 : vector<32x8xf32>
    %c1_87 = arith.constant 1 : index
    %c0_88 = arith.constant 0 : index
    %c0_89 = arith.constant 0 : index
    %144 = vector.load %arg6[%c1_87, %c0_88, %c0_89] : memref<5x4x8xf32, #tpu.memory_space<vmem>>, vector<1x4x8xf32>
    %145 = vector.shape_cast %144 : vector<1x4x8xf32> to vector<4x8xf32>
    %cst_90 = arith.constant dense<0.000000e+00> : vector<32x8xf32>
    %146 = tpu.matmul %24, %145, %cst_90 {dimension_numbers = #tpu.dot_dimension_numbers<[1], [0], [0], [1], [0, 0, 1, 1], [], []>} : vector<32x4xf32>, vector<4x8xf32>, vector<32x8xf32> -> vector<32x8xf32>
    %147 = arith.addf %143, %146 : vector<32x8xf32>
    %148 = vector.extract_strided_slice %120 {offsets = [0, 0], sizes = [16, 8], strides = [1, 1]} : vector<16x16xf32> to vector<16x8xf32>
    %149 = vector.extract_strided_slice %120 {offsets = [0, 8], sizes = [16, 8], strides = [1, 1]} : vector<16x16xf32> to vector<16x8xf32>
    %150 = tpu.concatenate %148, %149 in 0 : vector<16x8xf32>, vector<16x8xf32> -> vector<32x8xf32>
    %c1_91 = arith.constant 1 : index
    %c0_92 = arith.constant 0 : index
    %c0_93 = arith.constant 0 : index
    %151 = vector.load %arg7[%c1_91, %c0_92, %c0_93] : memref<5x8x8xf32, #tpu.memory_space<vmem>>, vector<1x8x8xf32>
    %152 = vector.shape_cast %151 : vector<1x8x8xf32> to vector<8x8xf32>
    %cst_94 = arith.constant dense<0.000000e+00> : vector<32x8xf32>
    %153 = tpu.matmul %150, %152, %cst_94 {dimension_numbers = #tpu.dot_dimension_numbers<[1], [0], [0], [1], [0, 0, 1, 1], [], []>} : vector<32x8xf32>, vector<8x8xf32>, vector<32x8xf32> -> vector<32x8xf32>
    %154 = arith.addf %147, %153 : vector<32x8xf32>
    %c2_95 = arith.constant 2 : index
    %c0_96 = arith.constant 0 : index
    %c0_97 = arith.constant 0 : index
    %155 = vector.load %arg6[%c2_95, %c0_96, %c0_97] : memref<5x4x8xf32, #tpu.memory_space<vmem>>, vector<1x4x8xf32>
    %156 = vector.shape_cast %155 : vector<1x4x8xf32> to vector<4x8xf32>
    %cst_98 = arith.constant dense<0.000000e+00> : vector<32x8xf32>
    %157 = tpu.matmul %27, %156, %cst_98 {dimension_numbers = #tpu.dot_dimension_numbers<[1], [0], [0], [1], [0, 0, 1, 1], [], []>} : vector<32x4xf32>, vector<4x8xf32>, vector<32x8xf32> -> vector<32x8xf32>
    %158 = arith.addf %154, %157 : vector<32x8xf32>
    %159 = vector.extract_strided_slice %124 {offsets = [0, 0], sizes = [16, 8], strides = [1, 1]} : vector<16x16xf32> to vector<16x8xf32>
    %160 = vector.extract_strided_slice %124 {offsets = [0, 8], sizes = [16, 8], strides = [1, 1]} : vector<16x16xf32> to vector<16x8xf32>
    %161 = tpu.concatenate %159, %160 in 0 : vector<16x8xf32>, vector<16x8xf32> -> vector<32x8xf32>
    %c2_99 = arith.constant 2 : index
    %c0_100 = arith.constant 0 : index
    %c0_101 = arith.constant 0 : index
    %162 = vector.load %arg7[%c2_99, %c0_100, %c0_101] : memref<5x8x8xf32, #tpu.memory_space<vmem>>, vector<1x8x8xf32>
    %163 = vector.shape_cast %162 : vector<1x8x8xf32> to vector<8x8xf32>
    %cst_102 = arith.constant dense<0.000000e+00> : vector<32x8xf32>
    %164 = tpu.matmul %161, %163, %cst_102 {dimension_numbers = #tpu.dot_dimension_numbers<[1], [0], [0], [1], [0, 0, 1, 1], [], []>} : vector<32x8xf32>, vector<8x8xf32>, vector<32x8xf32> -> vector<32x8xf32>
    %165 = arith.addf %158, %164 : vector<32x8xf32>
    %c3_103 = arith.constant 3 : index
    %c0_104 = arith.constant 0 : index
    %c0_105 = arith.constant 0 : index
    %166 = vector.load %arg6[%c3_103, %c0_104, %c0_105] : memref<5x4x8xf32, #tpu.memory_space<vmem>>, vector<1x4x8xf32>
    %167 = vector.shape_cast %166 : vector<1x4x8xf32> to vector<4x8xf32>
    %cst_106 = arith.constant dense<0.000000e+00> : vector<32x8xf32>
    %168 = tpu.matmul %30, %167, %cst_106 {dimension_numbers = #tpu.dot_dimension_numbers<[1], [0], [0], [1], [0, 0, 1, 1], [], []>} : vector<32x4xf32>, vector<4x8xf32>, vector<32x8xf32> -> vector<32x8xf32>
    %169 = arith.addf %165, %168 : vector<32x8xf32>
    %170 = vector.extract_strided_slice %127 {offsets = [0, 0], sizes = [16, 8], strides = [1, 1]} : vector<16x16xf32> to vector<16x8xf32>
    %171 = vector.extract_strided_slice %127 {offsets = [0, 8], sizes = [16, 8], strides = [1, 1]} : vector<16x16xf32> to vector<16x8xf32>
    %172 = tpu.concatenate %170, %171 in 0 : vector<16x8xf32>, vector<16x8xf32> -> vector<32x8xf32>
    %c3_107 = arith.constant 3 : index
    %c0_108 = arith.constant 0 : index
    %c0_109 = arith.constant 0 : index
    %173 = vector.load %arg7[%c3_107, %c0_108, %c0_109] : memref<5x8x8xf32, #tpu.memory_space<vmem>>, vector<1x8x8xf32>
    %174 = vector.shape_cast %173 : vector<1x8x8xf32> to vector<8x8xf32>
    %cst_110 = arith.constant dense<0.000000e+00> : vector<32x8xf32>
    %175 = tpu.matmul %172, %174, %cst_110 {dimension_numbers = #tpu.dot_dimension_numbers<[1], [0], [0], [1], [0, 0, 1, 1], [], []>} : vector<32x8xf32>, vector<8x8xf32>, vector<32x8xf32> -> vector<32x8xf32>
    %176 = arith.addf %169, %175 : vector<32x8xf32>
    %c4_111 = arith.constant 4 : index
    %c0_112 = arith.constant 0 : index
    %c0_113 = arith.constant 0 : index
    %177 = vector.load %arg6[%c4_111, %c0_112, %c0_113] : memref<5x4x8xf32, #tpu.memory_space<vmem>>, vector<1x4x8xf32>
    %178 = vector.shape_cast %177 : vector<1x4x8xf32> to vector<4x8xf32>
    %cst_114 = arith.constant dense<0.000000e+00> : vector<32x8xf32>
    %179 = tpu.matmul %33, %178, %cst_114 {dimension_numbers = #tpu.dot_dimension_numbers<[1], [0], [0], [1], [0, 0, 1, 1], [], []>} : vector<32x4xf32>, vector<4x8xf32>, vector<32x8xf32> -> vector<32x8xf32>
    %180 = arith.addf %176, %179 : vector<32x8xf32>
    %181 = vector.extract_strided_slice %131 {offsets = [0, 0], sizes = [16, 8], strides = [1, 1]} : vector<16x16xf32> to vector<16x8xf32>
    %182 = vector.extract_strided_slice %131 {offsets = [0, 8], sizes = [16, 8], strides = [1, 1]} : vector<16x16xf32> to vector<16x8xf32>
    %183 = tpu.concatenate %181, %182 in 0 : vector<16x8xf32>, vector<16x8xf32> -> vector<32x8xf32>
    %c4_115 = arith.constant 4 : index
    %c0_116 = arith.constant 0 : index
    %c0_117 = arith.constant 0 : index
    %184 = vector.load %arg7[%c4_115, %c0_116, %c0_117] : memref<5x8x8xf32, #tpu.memory_space<vmem>>, vector<1x8x8xf32>
    %185 = vector.shape_cast %184 : vector<1x8x8xf32> to vector<8x8xf32>
    %cst_118 = arith.constant dense<0.000000e+00> : vector<32x8xf32>
    %186 = tpu.matmul %183, %185, %cst_118 {dimension_numbers = #tpu.dot_dimension_numbers<[1], [0], [0], [1], [0, 0, 1, 1], [], []>} : vector<32x8xf32>, vector<8x8xf32>, vector<32x8xf32> -> vector<32x8xf32>
    %187 = arith.addf %180, %186 : vector<32x8xf32>
    %c0_119 = arith.constant 0 : index
    %c0_120 = arith.constant 0 : index
    %188 = vector.load %arg9[%c0_119, %c0_120] : memref<1x8xf32, #tpu.memory_space<vmem>>, vector<1x8xf32>
    %189 = vector.broadcast %188 : vector<1x8xf32> to vector<32x8xf32>
    %190 = arith.addf %187, %189 : vector<32x8xf32>
    %191 = math.tanh %190 : vector<32x8xf32>
    %192 = arith.mulf %113, %4 : vector<32x8xf32>
    %cst_121 = arith.constant 1.000000e+00 : f32
    %193 = vector.broadcast %cst_121 : f32 to vector<32x8xf32>
    %194 = arith.subf %193, %113 : vector<32x8xf32>
    %195 = arith.mulf %194, %191 : vector<32x8xf32>
    %196 = arith.addf %192, %195 : vector<32x8xf32>
    %197 = vector.extract_strided_slice %196 {offsets = [0, 0], sizes = [16, 8], strides = [1, 1]} : vector<32x8xf32> to vector<16x8xf32>
    %198 = vector.extract_strided_slice %196 {offsets = [16, 0], sizes = [16, 8], strides = [1, 1]} : vector<32x8xf32> to vector<16x8xf32>
    %199 = tpu.concatenate %197, %198 in 1 : vector<16x8xf32>, vector<16x8xf32> -> vector<16x16xf32>
    %c0_122 = arith.constant 0 : index
    %c0_123 = arith.constant 0 : index
    %200 = vector.load %arg10[%c0_122, %c0_123] : memref<16x16xf32, #tpu.memory_space<vmem>>, vector<16x16xf32>
    tpu.vector_store %arg10[%c0_122, %c0_123], %199 {strides = array<i32>} : memref<16x16xf32, #tpu.memory_space<vmem>>, vector<16x16xf32>,
    return
  }
  func.func @transform_0(%arg0: i32) -> (i32, i32, i32) {
    %c0_i32 = arith.constant 0 : i32
    %c0_i32_0 = arith.constant 0 : i32
    %c0_i32_1 = arith.constant 0 : i32
    %c0_i32_2 = arith.constant 0 : i32
    return %c0_i32, %c0_i32_0, %c0_i32_1 : i32, i32, i32
  }
  func.func @transform_1(%arg0: i32) -> (i32, i32) {
    %c0_i32 = arith.constant 0 : i32
    %c0_i32_0 = arith.constant 0 : i32
    return %c0_i32, %arg0 : i32, i32
  }
  func.func @transform_2(%arg0: i32) -> (i32, i32) {
    %c0_i32 = arith.constant 0 : i32
    %c0_i32_0 = arith.constant 0 : i32
    return %c0_i32, %arg0 : i32, i32
  }
  func.func @transform_3(%arg0: i32) -> (i32, i32, i32) {
    %c0_i32 = arith.constant 0 : i32
    %c0_i32_0 = arith.constant 0 : i32
    %c0_i32_1 = arith.constant 0 : i32
    %c0_i32_2 = arith.constant 0 : i32
    return %c0_i32, %c0_i32_0, %c0_i32_1 : i32, i32, i32
  }
  func.func @transform_4(%arg0: i32) -> (i32, i32, i32) {
    %c0_i32 = arith.constant 0 : i32
    %c0_i32_0 = arith.constant 0 : i32
    %c0_i32_1 = arith.constant 0 : i32
    %c0_i32_2 = arith.constant 0 : i32
    return %c0_i32, %c0_i32_0, %c0_i32_1 : i32, i32, i32
  }
  func.func @transform_5(%arg0: i32) -> (i32, i32, i32) {
    %c0_i32 = arith.constant 0 : i32
    %c0_i32_0 = arith.constant 0 : i32
    %c0_i32_1 = arith.constant 0 : i32
    %c0_i32_2 = arith.constant 0 : i32
    return %c0_i32, %c0_i32_0, %c0_i32_1 : i32, i32, i32
  }
  func.func @transform_6(%arg0: i32) -> (i32, i32, i32) {
    %c0_i32 = arith.constant 0 : i32
    %c0_i32_0 = arith.constant 0 : i32
    %c0_i32_1 = arith.constant 0 : i32
    %c0_i32_2 = arith.constant 0 : i32
    return %c0_i32, %c0_i32_0, %c0_i32_1 : i32, i32, i32
  }
  func.func @transform_7(%arg0: i32) -> (i32, i32) {
    %c0_i32 = arith.constant 0 : i32
    %c0_i32_0 = arith.constant 0 : i32
    %c0_i32_1 = arith.constant 0 : i32
    return %c0_i32, %c0_i32_0 : i32, i32
  }
  func.func @transform_8(%arg0: i32) -> (i32, i32) {
    %c0_i32 = arith.constant 0 : i32
    %c0_i32_0 = arith.constant 0 : i32
    %c0_i32_1 = arith.constant 0 : i32
    return %c0_i32, %c0_i32_0 : i32, i32
  }
  func.func @transform_9(%arg0: i32) -> (i32, i32) {
    %c0_i32 = arith.constant 0 : i32
    %c0_i32_0 = arith.constant 0 : i32
    return %c0_i32, %arg0 : i32, i32
  }
}

</mosaic_0001>

<llo_original>
// kernel: tpu_custom_call.1
$region0: #{tpu_custom_call.1}
  #allocation0 [shape = 'u32[]', space=smem, size = 0x4, offset = 0x4, fixed_abs, tag = 'smem constant byte address 0x4 - core index']
  #allocation1 [shape = 'u32[72,128]{1,0:T(1,128)}', space=vmem, size = 0x9000, scoped, tag = 'internal scratch']
  %s0 = inlined_call_operand.hbm [shape: f32[2,16,16], index: 0, kind: input, shape index: {}]
  %s1 = inlined_call_operand.vmem [shape: f32[16,8], index: 1, kind: input, shape index: {}]
  %s2 = inlined_call_operand.hbm [shape: f32[16,16], index: 2, kind: input, shape index: {}]
  %s3 = inlined_call_operand.vmem [shape: f32[5,4,16], index: 3, kind: input, shape index: {}]
  %s4 = inlined_call_operand.hbm [shape: f32[5,8,16], index: 4, kind: input, shape index: {}]
  %s5 = inlined_call_operand.hbm [shape: f32[5,4,8], index: 5, kind: input, shape index: {}]
  %s6 = inlined_call_operand.hbm [shape: f32[5,8,8], index: 6, kind: input, shape index: {}]
  %s7 = inlined_call_operand.vmem [shape: f32[1,16], index: 7, kind: input, shape index: {}]
  %s8 = inlined_call_operand.vmem [shape: f32[1,8], index: 8, kind: input, shape index: {}]
  %s9 = inlined_call_operand.hbm [shape: f32[16,16], index: 9, kind: output, shape index: {}]
  %s10 = sld [smem:[#allocation0]]
  $region66: #{tpu_custom_call.1} parent=0
    _
  %s12 = ssub.s32 1, %s10
  %s13 = scalar_select 0, %s12, %s10
  $region1: #{tpu_custom_call.1} parent=0
    #allocation2 [shape = 'u8[16384]{0}', space=vmem, size = 0x4000, scoped, tag = 'input window, operand 0, single buffered']
    #allocation3 [shape = 's32[1]{0}', space=sflag, size = 0x4, scoped, tag = 'scoped memory for tpu_custom_call.1']
    #allocation4 [shape = 's32[1]{0}', space=sflag, size = 0x4, scoped, tag = 'scoped memory for tpu_custom_call.1']
    #allocation5 [shape = 'u8[8192]{0}', space=vmem, size = 0x2000, scoped, tag = 'input window, operand 2, single buffered']
    #allocation6 [shape = 's32[1]{0}', space=sflag, size = 0x4, scoped, tag = 'scoped memory for tpu_custom_call.1']
    #allocation7 [shape = 'u8[20480]{0}', space=vmem, size = 0x5000, scoped, tag = 'input window, operand 4, single buffered']
    #allocation8 [shape = 'u8[10240]{0}', space=vmem, size = 0x2800, scoped, tag = 'input window, operand 5, single buffered']
    #allocation9 [shape = 's32[1]{0}', space=sflag, size = 0x4, scoped, tag = 'scoped memory for tpu_custom_call.1']
    #allocation10 [shape = 'u8[20480]{0}', space=vmem, size = 0x5000, scoped, tag = 'input window, operand 6, single buffered']
    #allocation11 [shape = 'u8[8192]{0}', space=vmem, size = 0x2000, scoped, tag = 'output window, operand 0, single buffered']
    %14 = vsyncpa [#allocation3], 0
    %15 = vsyncpa [#allocation6], 0
    %16 = vsyncpa [#allocation9], 0
    %17 = vsyncpa [#allocation4], 0
    // Predicated region
    $region2: #{tpu_custom_call.1} parent=1 // pred_check
      _
    $region3: #{tpu_custom_call.1} parent=1 // pred_check_branch
      %19 = sbr.rel (0) target = $region5
    $region4: #{tpu_custom_call.1} parent=1 // pred_region
      %21 = vsyncadd [#allocation3], 0
      %s22 = sshll.u32 %s0, 4
      %s23 = int_to_ptr.hbm [resolvable:$true] %s22
      %s24 = sshll.u32 [#allocation2], 4
      %s25 = int_to_ptr.vmem [resolvable:$true] %s24
      %30 = dma.hbm_to_vmem [thread:$0]  %s23, 512, %s25, [#allocation3], 128, 128, 8
    $region5: #{tpu_custom_call.1} parent=1 // pred_fallthru
      _
    // Predicated region
    $region6: #{tpu_custom_call.1} parent=1 // pred_check
      _
    $region7: #{tpu_custom_call.1} parent=1 // pred_check_branch
      %32 = sbr.rel (0) target = $region9
    $region8: #{tpu_custom_call.1} parent=1 // pred_region
      _
    $region9: #{tpu_custom_call.1} parent=1 // pred_fallthru
      _
    // Predicated region
    $region10: #{tpu_custom_call.1} parent=1 // pred_check
      _
    $region11: #{tpu_custom_call.1} parent=1 // pred_check_branch
      %34 = sbr.rel (0) target = $region13
    $region12: #{tpu_custom_call.1} parent=1 // pred_region
      %36 = vsyncadd [#allocation6], 0
      %s37 = sshll.u32 %s2, 4
      %s38 = int_to_ptr.hbm [resolvable:$true] %s37
      %s39 = sshll.u32 [#allocation5], 4
      %s40 = int_to_ptr.vmem [resolvable:$true] %s39
      %45 = dma.hbm_to_vmem [thread:$0]  %s38, 256, %s40, [#allocation6], 128, 128, 8
    $region13: #{tpu_custom_call.1} parent=1 // pred_fallthru
      _
    // Predicated region
    $region14: #{tpu_custom_call.1} parent=1 // pred_check
      _
    $region15: #{tpu_custom_call.1} parent=1 // pred_check_branch
      %47 = sbr.rel (0) target = $region17
    $region16: #{tpu_custom_call.1} parent=1 // pred_region
      _
    $region17: #{tpu_custom_call.1} parent=1 // pred_fallthru
      _
    // Predicated region
    $region18: #{tpu_custom_call.1} parent=1 // pred_check
      _
    $region19: #{tpu_custom_call.1} parent=1 // pred_check_branch
      %49 = sbr.rel (0) target = $region21
    $region20: #{tpu_custom_call.1} parent=1 // pred_region
      %51 = vsyncadd [#allocation6], 0
      %s52 = sshll.u32 %s4, 4
      %s53 = int_to_ptr.hbm [resolvable:$true] %s52
      %s54 = sshll.u32 [#allocation7], 4
      %s55 = int_to_ptr.vmem [resolvable:$true] %s54
      %60 = dma.hbm_to_vmem [thread:$0]  %s53, 640, %s55, [#allocation6], 128, 128, 8
    $region21: #{tpu_custom_call.1} parent=1 // pred_fallthru
      _
    // Predicated region
    $region22: #{tpu_custom_call.1} parent=1 // pred_check
      _
    $region23: #{tpu_custom_call.1} parent=1 // pred_check_branch
      %62 = sbr.rel (0) target = $region25
    $region24: #{tpu_custom_call.1} parent=1 // pred_region
      %64 = vsyncadd [#allocation9], 0
      %s65 = sshll.u32 %s5, 4
      %s66 = int_to_ptr.hbm [resolvable:$true] %s65
      %s67 = sshll.u32 [#allocation8], 4
      %s68 = int_to_ptr.vmem [resolvable:$true] %s67
      %73 = dma.hbm_to_vmem [thread:$0]  %s66, 320, %s68, [#allocation9], 64, 64, 4
    $region25: #{tpu_custom_call.1} parent=1 // pred_fallthru
      _
    // Predicated region
    $region26: #{tpu_custom_call.1} parent=1 // pred_check
      _
    $region27: #{tpu_custom_call.1} parent=1 // pred_check_branch
      %75 = sbr.rel (0) target = $region29
    $region28: #{tpu_custom_call.1} parent=1 // pred_region
      %77 = vsyncadd [#allocation9], 0
      %s78 = sshll.u32 %s6, 4
      %s79 = int_to_ptr.hbm [resolvable:$true] %s78
      %s80 = sshll.u32 [#allocation10], 4
      %s81 = int_to_ptr.vmem [resolvable:$true] %s80
      %86 = dma.hbm_to_vmem [thread:$0]  %s79, 640, %s81, [#allocation9], 128, 128, 8
    $region29: #{tpu_custom_call.1} parent=1 // pred_fallthru
      _
    // Predicated region
    $region30: #{tpu_custom_call.1} parent=1 // pred_check
      _
    $region31: #{tpu_custom_call.1} parent=1 // pred_check_branch
      %88 = sbr.rel (0) target = $region33
    $region32: #{tpu_custom_call.1} parent=1 // pred_region
      _
    $region33: #{tpu_custom_call.1} parent=1 // pred_fallthru
      _
    // Predicated region
    $region34: #{tpu_custom_call.1} parent=1 // pred_check
      _
    $region35: #{tpu_custom_call.1} parent=1 // pred_check_branch
      %90 = sbr.rel (0) target = $region37
    $region36: #{tpu_custom_call.1} parent=1 // pred_region
      _
    $region37: #{tpu_custom_call.1} parent=1 // pred_fallthru
      _
    // Predicated region
    $region38: #{tpu_custom_call.1} parent=1 // pred_check
      _
    $region39: #{tpu_custom_call.1} parent=1 // pred_check_branch
      %92 = sbr.rel (0) target = $region41
    $region40: #{tpu_custom_call.1} parent=1 // pred_region
      %94 = dma.done [#allocation3], 512
    $region41: #{tpu_custom_call.1} parent=1 // pred_fallthru
      _
    // Predicated region
    $region42: #{tpu_custom_call.1} parent=1 // pred_check
      _
    $region43: #{tpu_custom_call.1} parent=1 // pred_check_branch
      %96 = sbr.rel (0) target = $region45
    $region44: #{tpu_custom_call.1} parent=1 // pred_region
      %98 = dma.done [#allocation6], 256
    $region45: #{tpu_custom_call.1} parent=1 // pred_fallthru
      _
    // Predicated region
    $region46: #{tpu_custom_call.1} parent=1 // pred_check
      _
    $region47: #{tpu_custom_call.1} parent=1 // pred_check_branch
      %100 = sbr.rel (0) target = $region49
    $region48: #{tpu_custom_call.1} parent=1 // pred_region
      %102 = dma.done [#allocation6], 640
    $region49: #{tpu_custom_call.1} parent=1 // pred_fallthru
      _
    // Predicated region
    $region50: #{tpu_custom_call.1} parent=1 // pred_check
      _
    $region51: #{tpu_custom_call.1} parent=1 // pred_check_branch
      %104 = sbr.rel (0) target = $region53
    $region52: #{tpu_custom_call.1} parent=1 // pred_region
      %106 = dma.done [#allocation9], 320
    $region53: #{tpu_custom_call.1} parent=1 // pred_fallthru
      _
    // Predicated region
    $region54: #{tpu_custom_call.1} parent=1 // pred_check
      _
    $region55: #{tpu_custom_call.1} parent=1 // pred_check_branch
      %108 = sbr.rel (0) target = $region57
    $region56: #{tpu_custom_call.1} parent=1 // pred_region
      %110 = dma.done [#allocation9], 640
    $region57: #{tpu_custom_call.1} parent=1 // pred_fallthru
      _
    %v111 = vld [vmem:[%s1] sm:$0xff]
    %v112 = vld [vmem:[%s1 + $0x8] sm:$0xff]
    %v113 = vld [vmem:[#allocation5] sm:$0xff]
    %v114 = vld [vmem:[#allocation5 + $0x8] sm:$0xff]
    %117 = vrot.lane.b32.xlu0 %v113, 120
    %v118 = vpop.permute.xlu0 %117
    %119 = vrot.lane.b32.xlu0 %v114, 120
    %v120 = vpop.permute.xlu0 %119
    %v123 = vld [vmem:[#allocation2] sm:$0xff]
    %v124 = vld [vmem:[#allocation2 + $0x8] sm:$0xff]
    %vm125 = vcmask 130048
    %v127 = vsel %vm125, %v123, 0
    %v130 = vsel %vm125, %v124, 0
    %132 = vmatpush.msra.mxu0 0.0
    %133 = vmatpush.msra.mxu0 0.0
    %134 = vmatpush.msra.mxu0 0.0
    %135 = vmatpush.msra.mxu0 0.0
    %136 = vmatpush.msra.mxu0 0.0
    %137 = vmatpush.msra.mxu0 0.0
    %138 = vmatpush.msra.mxu0 0.0
    %139 = vmatpush.msra.mxu0 0.0
    %140 = vmatpush.msra.mxu0 0.0
    %141 = vmatpush.msra.mxu0 0.0
    %142 = vmatpush.msra.mxu0 0.0
    %143 = vmatpush.msra.mxu0 0.0
    %144 = vmatpush.msra.mxu0 0.0
    %145 = vmatpush.msra.mxu0 0.0
    %146 = vmatpush.msra.mxu0 %v112
    %147 = vmatpush.msra.mxu0 %v111
    %148 = vmatmul.f32.gmra.mxu0 %v127
    %v149 = vpop.f32.mrf.mxu0
    %v150 = vadd.f32 0.0, %v149
    %151 = vmatmul.f32.gmra.mxu0 %v130
    %v152 = vpop.f32.mrf.mxu0
    %v153 = vadd.f32 0.0, %v152
    %154 = vdwg.mxu0
    %155 = vmatpush.msra.mxu0 0.0
    %156 = vmatpush.msra.mxu0 0.0
    %157 = vmatpush.msra.mxu0 0.0
    %158 = vmatpush.msra.mxu0 0.0
    %159 = vmatpush.msra.mxu0 0.0
    %160 = vmatpush.msra.mxu0 0.0
    %161 = vmatpush.msra.mxu0 0.0
    %162 = vmatpush.msra.mxu0 0.0
    %163 = vmatpush.msra.mxu0 0.0
    %164 = vmatpush.msra.mxu0 0.0
    %165 = vmatpush.msra.mxu0 0.0
    %166 = vmatpush.msra.mxu0 0.0
    %167 = vmatpush.msra.mxu0 0.0
    %168 = vmatpush.msra.mxu0 0.0
    %169 = vmatpush.msra.mxu0 %v153
    %170 = vmatpush.msra.mxu0 %v150
    %171 = vmatmul.f32.gmra.mxu0 %v127
    %v172 = vpop.f32.mrf.mxu0
    %v173 = vadd.f32 0.0, %v172
    %174 = vmatmul.f32.gmra.mxu0 %v130
    %v175 = vpop.f32.mrf.mxu0
    %v176 = vadd.f32 0.0, %v175
    %177 = vdwg.mxu0
    %v178 = vmul.f32 %v173, 2.0
    %v179 = vmul.f32 %v176, 2.0
    %v180 = vsub.f32 %v178, %v111
    %v181 = vsub.f32 %v179, %v112
    %s182 = scalar_lea.vmem [#allocation2], 16
    %v183 = vld [vmem:[%s182] sm:$0xff]
    %v184 = vld [vmem:[%s182 + $0x8] sm:$0xff]
    %v186 = vsel %vm125, %v183, 0
    %v189 = vsel %vm125, %v184, 0
    %191 = vmatpush.msra.mxu0 0.0
    %192 = vmatpush.msra.mxu0 0.0
    %193 = vmatpush.msra.mxu0 0.0
    %194 = vmatpush.msra.mxu0 0.0
    %195 = vmatpush.msra.mxu0 0.0
    %196 = vmatpush.msra.mxu0 0.0
    %197 = vmatpush.msra.mxu0 0.0
    %198 = vmatpush.msra.mxu0 0.0
    %199 = vmatpush.msra.mxu0 0.0
    %200 = vmatpush.msra.mxu0 0.0
    %201 = vmatpush.msra.mxu0 0.0
    %202 = vmatpush.msra.mxu0 0.0
    %203 = vmatpush.msra.mxu0 0.0
    %204 = vmatpush.msra.mxu0 0.0
    %205 = vmatpush.msra.mxu0 %v153
    %206 = vmatpush.msra.mxu0 %v150
    %207 = vmatmul.f32.gmra.mxu0 %v186
    %v208 = vpop.f32.mrf.mxu0
    %v209 = vadd.f32 0.0, %v208
    %210 = vmatmul.f32.gmra.mxu0 %v189
    %v211 = vpop.f32.mrf.mxu0
    %v212 = vadd.f32 0.0, %v211
    %213 = vdwg.mxu0
    %214 = vmatpush.msra.mxu0 0.0
    %215 = vmatpush.msra.mxu0 0.0
    %216 = vmatpush.msra.mxu0 0.0
    %217 = vmatpush.msra.mxu0 0.0
    %218 = vmatpush.msra.mxu0 0.0
    %219 = vmatpush.msra.mxu0 0.0
    %220 = vmatpush.msra.mxu0 0.0
    %221 = vmatpush.msra.mxu0 0.0
    %222 = vmatpush.msra.mxu0 0.0
    %223 = vmatpush.msra.mxu0 0.0
    %224 = vmatpush.msra.mxu0 0.0
    %225 = vmatpush.msra.mxu0 0.0
    %226 = vmatpush.msra.mxu0 0.0
    %227 = vmatpush.msra.mxu0 0.0
    %228 = vmatpush.msra.mxu0 %v212
    %229 = vmatpush.msra.mxu0 %v209
    %230 = vmatmul.f32.gmra.mxu0 %v186
    %v231 = vpop.f32.mrf.mxu0
    %v232 = vadd.f32 0.0, %v231
    %233 = vmatmul.f32.gmra.mxu0 %v189
    %v234 = vpop.f32.mrf.mxu0
    %v235 = vadd.f32 0.0, %v234
    %236 = vdwg.mxu0
    %v237 = vmul.f32 %v232, 2.0
    %v238 = vmul.f32 %v235, 2.0
    %v239 = vsub.f32 %v237, %v150
    %v240 = vsub.f32 %v238, %v153
    %243 = vrot.lane.b32.xlu0 %v111, 124
    %v244 = vpop.permute.xlu0 %243
    %245 = vrot.lane.b32.xlu0 %v112, 124
    %v246 = vpop.permute.xlu0 %245
    %249 = vrot.lane.b32.xlu0 %v150, 124
    %v250 = vpop.permute.xlu0 %249
    %251 = vrot.lane.b32.xlu0 %v153, 124
    %v252 = vpop.permute.xlu0 %251
    %255 = vrot.lane.b32.xlu0 %v180, 124
    %v256 = vpop.permute.xlu0 %255
    %257 = vrot.lane.b32.xlu0 %v181, 124
    %v258 = vpop.permute.xlu0 %257
    %261 = vrot.lane.b32.xlu0 %v209, 124
    %v262 = vpop.permute.xlu0 %261
    %263 = vrot.lane.b32.xlu0 %v212, 124
    %v264 = vpop.permute.xlu0 %263
    %267 = vrot.lane.b32.xlu0 %v239, 124
    %v268 = vpop.permute.xlu0 %267
    %269 = vrot.lane.b32.xlu0 %v240, 124
    %v270 = vpop.permute.xlu0 %269
    %271 = vmatpush.msra.mxu0 0.0
    %272 = vmatpush.msra.mxu0 0.0
    %273 = vmatpush.msra.mxu0 0.0
    %274 = vmatpush.msra.mxu0 0.0
    %275 = vmatpush.msra.mxu0 0.0
    %276 = vmatpush.msra.mxu0 0.0
    %277 = vmatpush.msra.mxu0 0.0
    %278 = vmatpush.msra.mxu0 0.0
    %279 = vmatpush.msra.mxu0 0.0
    %280 = vmatpush.msra.mxu0 0.0
    %281 = vmatpush.msra.mxu0 0.0
    %282 = vmatpush.msra.mxu0 0.0
    %283 = vmatpush.msra.mxu0 0.0
    %284 = vmatpush.msra.mxu0 0.0
    %285 = vmatpush.msra.mxu0 %v114
    %286 = vmatpush.msra.mxu0 %v113
    %287 = vmatmul.f32.gmra.mxu0 %v127
    %v288 = vpop.f32.mrf.mxu0
    %v289 = vadd.f32 0.0, %v288
    %290 = vmatmul.f32.gmra.mxu0 %v130
    %v291 = vpop.f32.mrf.mxu0
    %v292 = vadd.f32 0.0, %v291
    %293 = vdwg.mxu0
    %294 = vmatpush.msra.mxu0 0.0
    %295 = vmatpush.msra.mxu0 0.0
    %296 = vmatpush.msra.mxu0 0.0
    %297 = vmatpush.msra.mxu0 0.0
    %298 = vmatpush.msra.mxu0 0.0
    %299 = vmatpush.msra.mxu0 0.0
    %300 = vmatpush.msra.mxu0 0.0
    %301 = vmatpush.msra.mxu0 0.0
    %302 = vmatpush.msra.mxu0 0.0
    %303 = vmatpush.msra.mxu0 0.0
    %304 = vmatpush.msra.mxu0 0.0
    %305 = vmatpush.msra.mxu0 0.0
    %306 = vmatpush.msra.mxu0 0.0
    %307 = vmatpush.msra.mxu0 0.0
    %308 = vmatpush.msra.mxu0 %v292
    %309 = vmatpush.msra.mxu0 %v289
    %310 = vmatmul.f32.gmra.mxu0 %v127
    %v311 = vpop.f32.mrf.mxu0
    %v312 = vadd.f32 0.0, %v311
    %313 = vmatmul.f32.gmra.mxu0 %v130
    %v314 = vpop.f32.mrf.mxu0
    %v315 = vadd.f32 0.0, %v314
    %316 = vdwg.mxu0
    %v317 = vmul.f32 %v312, 2.0
    %v318 = vmul.f32 %v315, 2.0
    %v319 = vsub.f32 %v317, %v113
    %v320 = vsub.f32 %v318, %v114
    %321 = vmatpush.msra.mxu0 0.0
    %322 = vmatpush.msra.mxu0 0.0
    %323 = vmatpush.msra.mxu0 0.0
    %324 = vmatpush.msra.mxu0 0.0
    %325 = vmatpush.msra.mxu0 0.0
    %326 = vmatpush.msra.mxu0 0.0
    %327 = vmatpush.msra.mxu0 0.0
    %328 = vmatpush.msra.mxu0 0.0
    %329 = vmatpush.msra.mxu0 0.0
    %330 = vmatpush.msra.mxu0 0.0
    %331 = vmatpush.msra.mxu0 0.0
    %332 = vmatpush.msra.mxu0 0.0
    %333 = vmatpush.msra.mxu0 0.0
    %334 = vmatpush.msra.mxu0 0.0
    %335 = vmatpush.msra.mxu0 %v292
    %336 = vmatpush.msra.mxu0 %v289
    %337 = vmatmul.f32.gmra.mxu0 %v186
    %v338 = vpop.f32.mrf.mxu0
    %v339 = vadd.f32 0.0, %v338
    %340 = vmatmul.f32.gmra.mxu0 %v189
    %v341 = vpop.f32.mrf.mxu0
    %v342 = vadd.f32 0.0, %v341
    %343 = vdwg.mxu0
    %344 = vmatpush.msra.mxu0 0.0
    %345 = vmatpush.msra.mxu0 0.0
    %346 = vmatpush.msra.mxu0 0.0
    %347 = vmatpush.msra.mxu0 0.0
    %348 = vmatpush.msra.mxu0 0.0
    %349 = vmatpush.msra.mxu0 0.0
    %350 = vmatpush.msra.mxu0 0.0
    %351 = vmatpush.msra.mxu0 0.0
    %352 = vmatpush.msra.mxu0 0.0
    %353 = vmatpush.msra.mxu0 0.0
    %354 = vmatpush.msra.mxu0 0.0
    %355 = vmatpush.msra.mxu0 0.0
    %356 = vmatpush.msra.mxu0 0.0
    %357 = vmatpush.msra.mxu0 0.0
    %358 = vmatpush.msra.mxu0 %v342
    %359 = vmatpush.msra.mxu0 %v339
    %360 = vmatmul.f32.gmra.mxu0 %v186
    %v361 = vpop.f32.mrf.mxu0
    %v362 = vadd.f32 0.0, %v361
    %363 = vmatmul.f32.gmra.mxu0 %v189
    %v364 = vpop.f32.mrf.mxu0
    %v365 = vadd.f32 0.0, %v364
    %366 = vdwg.mxu0
    %v367 = vmul.f32 %v362, 2.0
    %v368 = vmul.f32 %v365, 2.0
    %v369 = vsub.f32 %v367, %v289
    %v370 = vsub.f32 %v368, %v292
    %v371 = vld [vmem:[%s3] sm:$0xf]
    %v372 = vld [vmem:[#allocation7] sm:$0xff]
    %vm373 = vcmask 64512
    %v374 = vsel %vm373, %v113, 0
    %v376 = vsel %vm373, %v114, 0
    %v378 = vsel %vm373, %v118, 0
    %v380 = vsel %vm373, %v120, 0
    %382 = vmatpush.msra.mxu0 0.0
    %383 = vmatpush.msra.mxu0 0.0
    %384 = vmatpush.msra.mxu0 0.0
    %385 = vmatpush.msra.mxu0 0.0
    %386 = vmatpush.msra.mxu0 0.0
    %387 = vmatpush.msra.mxu0 0.0
    %388 = vmatpush.msra.mxu0 0.0
    %389 = vmatpush.msra.mxu0 0.0
    %390 = vmatpush.msra.mxu0 0.0
    %391 = vmatpush.msra.mxu0 0.0
    %392 = vmatpush.msra.mxu0 0.0
    %393 = vmatpush.msra.mxu0 0.0
    %394 = vmatpush.msra.mxu0 0.0
    %395 = vmatpush.msra.mxu0 0.0
    %396 = vmatpush.msra.mxu0 0.0
    %397 = vmatpush.msra.mxu0 %v372
    %398 = vmatmul.f32.gmra.mxu0 %v374
    %v399 = vpop.f32.mrf.mxu0
    %v400 = vadd.f32 0.0, %v399
    %401 = vmatmul.f32.gmra.mxu0 %v376
    %v402 = vpop.f32.mrf.mxu0
    %v403 = vadd.f32 0.0, %v402
    %404 = vmatmul.f32.gmra.mxu0 %v378
    %v405 = vpop.f32.mrf.mxu0
    %v406 = vadd.f32 0.0, %v405
    %407 = vmatmul.f32.gmra.mxu0 %v380
    %v408 = vpop.f32.mrf.mxu0
    %v409 = vadd.f32 0.0, %v408
    %410 = vdwg.mxu0
    %vm411 = vcmask 31744
    %v412 = vsel %vm411, %v111, 0
    %v414 = vsel %vm411, %v112, 0
    %v416 = vsel %vm411, %v244, 0
    %v418 = vsel %vm411, %v246, 0
    %vm420 = vcmask 1043456
    %v422 = vsel %vm420, %v371, 0
    %424 = vmatpush.msra.mxu0 0.0
    %425 = vmatpush.msra.mxu0 0.0
    %426 = vmatpush.msra.mxu0 0.0
    %427 = vmatpush.msra.mxu0 0.0
    %428 = vmatpush.msra.mxu0 0.0
    %429 = vmatpush.msra.mxu0 0.0
    %430 = vmatpush.msra.mxu0 0.0
    %431 = vmatpush.msra.mxu0 0.0
    %432 = vmatpush.msra.mxu0 0.0
    %433 = vmatpush.msra.mxu0 0.0
    %434 = vmatpush.msra.mxu0 0.0
    %435 = vmatpush.msra.mxu0 0.0
    %436 = vmatpush.msra.mxu0 0.0
    %437 = vmatpush.msra.mxu0 0.0
    %438 = vmatpush.msra.mxu0 0.0
    %439 = vmatpush.msra.mxu0 %v422
    %440 = vmatmul.f32.gmra.mxu0 %v412
    %v441 = vpop.f32.mrf.mxu0
    %v442 = vadd.f32 %v400, %v441
    %443 = vmatmul.f32.gmra.mxu0 %v414
    %v444 = vpop.f32.mrf.mxu0
    %v445 = vadd.f32 %v403, %v444
    %446 = vmatmul.f32.gmra.mxu0 %v416
    %v447 = vpop.f32.mrf.mxu0
    %v448 = vadd.f32 %v406, %v447
    %449 = vmatmul.f32.gmra.mxu0 %v418
    %v450 = vpop.f32.mrf.mxu0
    %v451 = vadd.f32 %v409, %v450
    %452 = vdwg.mxu0
    %s453 = scalar_lea.vmem %s3, 4
    %v454 = vld [vmem:[%s453] sm:$0xf]
    %v455 = vsel %vm411, %v150, 0
    %v457 = vsel %vm411, %v153, 0
    %v459 = vsel %vm411, %v250, 0
    %v461 = vsel %vm411, %v252, 0
    %v464 = vsel %vm420, %v454, 0
    %466 = vmatpush.msra.mxu0 0.0
    %467 = vmatpush.msra.mxu0 0.0
    %468 = vmatpush.msra.mxu0 0.0
    %469 = vmatpush.msra.mxu0 0.0
    %470 = vmatpush.msra.mxu0 0.0
    %471 = vmatpush.msra.mxu0 0.0
    %472 = vmatpush.msra.mxu0 0.0
    %473 = vmatpush.msra.mxu0 0.0
    %474 = vmatpush.msra.mxu0 0.0
    %475 = vmatpush.msra.mxu0 0.0
    %476 = vmatpush.msra.mxu0 0.0
    %477 = vmatpush.msra.mxu0 0.0
    %478 = vmatpush.msra.mxu0 0.0
    %479 = vmatpush.msra.mxu0 0.0
    %480 = vmatpush.msra.mxu0 0.0
    %481 = vmatpush.msra.mxu0 %v464
    %482 = vmatmul.f32.gmra.mxu0 %v455
    %v483 = vpop.f32.mrf.mxu0
    %v484 = vadd.f32 0.0, %v483
    %485 = vmatmul.f32.gmra.mxu0 %v457
    %v486 = vpop.f32.mrf.mxu0
    %v487 = vadd.f32 0.0, %v486
    %488 = vmatmul.f32.gmra.mxu0 %v459
    %v489 = vpop.f32.mrf.mxu0
    %v490 = vadd.f32 0.0, %v489
    %491 = vmatmul.f32.gmra.mxu0 %v461
    %v492 = vpop.f32.mrf.mxu0
    %v493 = vadd.f32 0.0, %v492
    %494 = vdwg.mxu0
    %v495 = vadd.f32 %v442, %v484
    %v496 = vadd.f32 %v445, %v487
    %v497 = vadd.f32 %v448, %v490
    %v498 = vadd.f32 %v451, %v493
    %501 = vrot.lane.b32.xlu0 %v289, 120
    %v502 = vpop.permute.xlu0 %501
    %503 = vrot.lane.b32.xlu0 %v292, 120
    %v504 = vpop.permute.xlu0 %503
    %s505 = scalar_lea.vmem [#allocation7], 8
    %v506 = vld [vmem:[%s505] sm:$0xff]
    %v507 = vsel %vm373, %v289, 0
    %v509 = vsel %vm373, %v292, 0
    %v511 = vsel %vm373, %v502, 0
    %v513 = vsel %vm373, %v504, 0
    %515 = vmatpush.msra.mxu0 0.0
    %516 = vmatpush.msra.mxu0 0.0
    %517 = vmatpush.msra.mxu0 0.0
    %518 = vmatpush.msra.mxu0 0.0
    %519 = vmatpush.msra.mxu0 0.0
    %520 = vmatpush.msra.mxu0 0.0
    %521 = vmatpush.msra.mxu0 0.0
    %522 = vmatpush.msra.mxu0 0.0
    %523 = vmatpush.msra.mxu0 0.0
    %524 = vmatpush.msra.mxu0 0.0
    %525 = vmatpush.msra.mxu0 0.0
    %526 = vmatpush.msra.mxu0 0.0
    %527 = vmatpush.msra.mxu0 0.0
    %528 = vmatpush.msra.mxu0 0.0
    %529 = vmatpush.msra.mxu0 0.0
    %530 = vmatpush.msra.mxu0 %v506
    %531 = vmatmul.f32.gmra.mxu0 %v507
    %v532 = vpop.f32.mrf.mxu0
    %v533 = vadd.f32 0.0, %v532
    %534 = vmatmul.f32.gmra.mxu0 %v509
    %v535 = vpop.f32.mrf.mxu0
    %v536 = vadd.f32 0.0, %v535
    %537 = vmatmul.f32.gmra.mxu0 %v511
    %v538 = vpop.f32.mrf.mxu0
    %v539 = vadd.f32 0.0, %v538
    %540 = vmatmul.f32.gmra.mxu0 %v513
    %v541 = vpop.f32.mrf.mxu0
    %v542 = vadd.f32 0.0, %v541
    %543 = vdwg.mxu0
    %v544 = vadd.f32 %v495, %v533
    %v545 = vadd.f32 %v496, %v536
    %v546 = vadd.f32 %v497, %v539
    %v547 = vadd.f32 %v498, %v542
    %s548 = scalar_lea.vmem %s3, 8
    %v549 = vld [vmem:[%s548] sm:$0xf]
    %v550 = vsel %vm411, %v180, 0
    %v552 = vsel %vm411, %v181, 0
    %v554 = vsel %vm411, %v256, 0
    %v556 = vsel %vm411, %v258, 0
    %v559 = vsel %vm420, %v549, 0
    %561 = vmatpush.msra.mxu0 0.0
    %562 = vmatpush.msra.mxu0 0.0
    %563 = vmatpush.msra.mxu0 0.0
    %564 = vmatpush.msra.mxu0 0.0
    %565 = vmatpush.msra.mxu0 0.0
    %566 = vmatpush.msra.mxu0 0.0
    %567 = vmatpush.msra.mxu0 0.0
    %568 = vmatpush.msra.mxu0 0.0
    %569 = vmatpush.msra.mxu0 0.0
    %570 = vmatpush.msra.mxu0 0.0
    %571 = vmatpush.msra.mxu0 0.0
    %572 = vmatpush.msra.mxu0 0.0
    %573 = vmatpush.msra.mxu0 0.0
    %574 = vmatpush.msra.mxu0 0.0
    %575 = vmatpush.msra.mxu0 0.0
    %576 = vmatpush.msra.mxu0 %v559
    %577 = vmatmul.f32.gmra.mxu0 %v550
    %v578 = vpop.f32.mrf.mxu0
    %v579 = vadd.f32 0.0, %v578
    %580 = vmatmul.f32.gmra.mxu0 %v552
    %v581 = vpop.f32.mrf.mxu0
    %v582 = vadd.f32 0.0, %v581
    %583 = vmatmul.f32.gmra.mxu0 %v554
    %v584 = vpop.f32.mrf.mxu0
    %v585 = vadd.f32 0.0, %v584
    %586 = vmatmul.f32.gmra.mxu0 %v556
    %v587 = vpop.f32.mrf.mxu0
    %v588 = vadd.f32 0.0, %v587
    %589 = vdwg.mxu0
    %v590 = vadd.f32 %v544, %v579
    %v591 = vadd.f32 %v545, %v582
    %v592 = vadd.f32 %v546, %v585
    %v593 = vadd.f32 %v547, %v588
    %596 = vrot.lane.b32.xlu0 %v319, 120
    %v597 = vpop.permute.xlu0 %596
    %598 = vrot.lane.b32.xlu0 %v320, 120
    %v599 = vpop.permute.xlu0 %598
    %s600 = scalar_lea.vmem [#allocation7], 16
    %v601 = vld [vmem:[%s600] sm:$0xff]
    %v602 = vsel %vm373, %v319, 0
    %v604 = vsel %vm373, %v320, 0
    %v606 = vsel %vm373, %v597, 0
    %v608 = vsel %vm373, %v599, 0
    %610 = vmatpush.msra.mxu0 0.0
    %611 = vmatpush.msra.mxu0 0.0
    %612 = vmatpush.msra.mxu0 0.0
    %613 = vmatpush.msra.mxu0 0.0
    %614 = vmatpush.msra.mxu0 0.0
    %615 = vmatpush.msra.mxu0 0.0
    %616 = vmatpush.msra.mxu0 0.0
    %617 = vmatpush.msra.mxu0 0.0
    %618 = vmatpush.msra.mxu0 0.0
    %619 = vmatpush.msra.mxu0 0.0
    %620 = vmatpush.msra.mxu0 0.0
    %621 = vmatpush.msra.mxu0 0.0
    %622 = vmatpush.msra.mxu0 0.0
    %623 = vmatpush.msra.mxu0 0.0
    %624 = vmatpush.msra.mxu0 0.0
    %625 = vmatpush.msra.mxu0 %v601
    %626 = vmatmul.f32.gmra.mxu0 %v602
    %v627 = vpop.f32.mrf.mxu0
    %v628 = vadd.f32 0.0, %v627
    %629 = vmatmul.f32.gmra.mxu0 %v604
    %v630 = vpop.f32.mrf.mxu0
    %v631 = vadd.f32 0.0, %v630
    %632 = vmatmul.f32.gmra.mxu0 %v606
    %v633 = vpop.f32.mrf.mxu0
    %v634 = vadd.f32 0.0, %v633
    %635 = vmatmul.f32.gmra.mxu0 %v608
    %v636 = vpop.f32.mrf.mxu0
    %v637 = vadd.f32 0.0, %v636
    %638 = vdwg.mxu0
    %v639 = vadd.f32 %v590, %v628
    %v640 = vadd.f32 %v591, %v631
    %v641 = vadd.f32 %v592, %v634
    %v642 = vadd.f32 %v593, %v637
    %s643 = scalar_lea.vmem %s3, 12
    %v644 = vld [vmem:[%s643] sm:$0xf]
    %v645 = vsel %vm411, %v209, 0
    %v647 = vsel %vm411, %v212, 0
    %v649 = vsel %vm411, %v262, 0
    %v651 = vsel %vm411, %v264, 0
    %v654 = vsel %vm420, %v644, 0
    %656 = vmatpush.msra.mxu0 0.0
    %657 = vmatpush.msra.mxu0 0.0
    %658 = vmatpush.msra.mxu0 0.0
    %659 = vmatpush.msra.mxu0 0.0
    %660 = vmatpush.msra.mxu0 0.0
    %661 = vmatpush.msra.mxu0 0.0
    %662 = vmatpush.msra.mxu0 0.0
    %663 = vmatpush.msra.mxu0 0.0
    %664 = vmatpush.msra.mxu0 0.0
    %665 = vmatpush.msra.mxu0 0.0
    %666 = vmatpush.msra.mxu0 0.0
    %667 = vmatpush.msra.mxu0 0.0
    %668 = vmatpush.msra.mxu0 0.0
    %669 = vmatpush.msra.mxu0 0.0
    %670 = vmatpush.msra.mxu0 0.0
    %671 = vmatpush.msra.mxu0 %v654
    %672 = vmatmul.f32.gmra.mxu0 %v645
    %v673 = vpop.f32.mrf.mxu0
    %v674 = vadd.f32 0.0, %v673
    %675 = vmatmul.f32.gmra.mxu0 %v647
    %v676 = vpop.f32.mrf.mxu0
    %v677 = vadd.f32 0.0, %v676
    %678 = vmatmul.f32.gmra.mxu0 %v649
    %v679 = vpop.f32.mrf.mxu0
    %v680 = vadd.f32 0.0, %v679
    %681 = vmatmul.f32.gmra.mxu0 %v651
    %v682 = vpop.f32.mrf.mxu0
    %v683 = vadd.f32 0.0, %v682
    %684 = vdwg.mxu0
    %v685 = vadd.f32 %v639, %v674
    %v686 = vadd.f32 %v640, %v677
    %v687 = vadd.f32 %v641, %v680
    %v688 = vadd.f32 %v642, %v683
    %691 = vrot.lane.b32.xlu0 %v339, 120
    %v692 = vpop.permute.xlu0 %691
    %693 = vrot.lane.b32.xlu0 %v342, 120
    %v694 = vpop.permute.xlu0 %693
    %s695 = scalar_lea.vmem [#allocation7], 24
    %v696 = vld [vmem:[%s695] sm:$0xff]
    %v697 = vsel %vm373, %v339, 0
    %v699 = vsel %vm373, %v342, 0
    %v701 = vsel %vm373, %v692, 0
    %v703 = vsel %vm373, %v694, 0
    %705 = vmatpush.msra.mxu0 0.0
    %706 = vmatpush.msra.mxu0 0.0
    %707 = vmatpush.msra.mxu0 0.0
    %708 = vmatpush.msra.mxu0 0.0
    %709 = vmatpush.msra.mxu0 0.0
    %710 = vmatpush.msra.mxu0 0.0
    %711 = vmatpush.msra.mxu0 0.0
    %712 = vmatpush.msra.mxu0 0.0
    %713 = vmatpush.msra.mxu0 0.0
    %714 = vmatpush.msra.mxu0 0.0
    %715 = vmatpush.msra.mxu0 0.0
    %716 = vmatpush.msra.mxu0 0.0
    %717 = vmatpush.msra.mxu0 0.0
    %718 = vmatpush.msra.mxu0 0.0
    %719 = vmatpush.msra.mxu0 0.0
    %720 = vmatpush.msra.mxu0 %v696
    %721 = vmatmul.f32.gmra.mxu0 %v697
    %v722 = vpop.f32.mrf.mxu0
    %v723 = vadd.f32 0.0, %v722
    %724 = vmatmul.f32.gmra.mxu0 %v699
    %v725 = vpop.f32.mrf.mxu0
    %v726 = vadd.f32 0.0, %v725
    %727 = vmatmul.f32.gmra.mxu0 %v701
    %v728 = vpop.f32.mrf.mxu0
    %v729 = vadd.f32 0.0, %v728
    %730 = vmatmul.f32.gmra.mxu0 %v703
    %v731 = vpop.f32.mrf.mxu0
    %v732 = vadd.f32 0.0, %v731
    %733 = vdwg.mxu0
    %v734 = vadd.f32 %v685, %v723
    %v735 = vadd.f32 %v686, %v726
    %v736 = vadd.f32 %v687, %v729
    %v737 = vadd.f32 %v688, %v732
    %s738 = scalar_lea.vmem %s3, 16
    %v739 = vld [vmem:[%s738] sm:$0xf]
    %v740 = vsel %vm411, %v239, 0
    %v742 = vsel %vm411, %v240, 0
    %v744 = vsel %vm411, %v268, 0
    %v746 = vsel %vm411, %v270, 0
    %v749 = vsel %vm420, %v739, 0
    %751 = vmatpush.msra.mxu0 0.0
    %752 = vmatpush.msra.mxu0 0.0
    %753 = vmatpush.msra.mxu0 0.0
    %754 = vmatpush.msra.mxu0 0.0
    %755 = vmatpush.msra.mxu0 0.0
    %756 = vmatpush.msra.mxu0 0.0
    %757 = vmatpush.msra.mxu0 0.0
    %758 = vmatpush.msra.mxu0 0.0
    %759 = vmatpush.msra.mxu0 0.0
    %760 = vmatpush.msra.mxu0 0.0
    %761 = vmatpush.msra.mxu0 0.0
    %762 = vmatpush.msra.mxu0 0.0
    %763 = vmatpush.msra.mxu0 0.0
    %764 = vmatpush.msra.mxu0 0.0
    %765 = vmatpush.msra.mxu0 0.0
    %766 = vmatpush.msra.mxu0 %v749
    %767 = vmatmul.f32.gmra.mxu0 %v740
    %v768 = vpop.f32.mrf.mxu0
    %v769 = vadd.f32 0.0, %v768
    %770 = vmatmul.f32.gmra.mxu0 %v742
    %v771 = vpop.f32.mrf.mxu0
    %v772 = vadd.f32 0.0, %v771
    %773 = vmatmul.f32.gmra.mxu0 %v744
    %v774 = vpop.f32.mrf.mxu0
    %v775 = vadd.f32 0.0, %v774
    %776 = vmatmul.f32.gmra.mxu0 %v746
    %v777 = vpop.f32.mrf.mxu0
    %v778 = vadd.f32 0.0, %v777
    %779 = vdwg.mxu0
    %v780 = vadd.f32 %v734, %v769
    %v781 = vadd.f32 %v735, %v772
    %v782 = vadd.f32 %v736, %v775
    %v783 = vadd.f32 %v737, %v778
    %786 = vrot.lane.b32.xlu0 %v369, 120
    %v787 = vpop.permute.xlu0 %786
    %788 = vrot.lane.b32.xlu0 %v370, 120
    %v789 = vpop.permute.xlu0 %788
    %s790 = scalar_lea.vmem [#allocation7], 32
    %v791 = vld [vmem:[%s790] sm:$0xff]
    %v792 = vsel %vm373, %v369, 0
    %v794 = vsel %vm373, %v370, 0
    %v796 = vsel %vm373, %v787, 0
    %v798 = vsel %vm373, %v789, 0
    %800 = vmatpush.msra.mxu0 0.0
    %801 = vmatpush.msra.mxu0 0.0
    %802 = vmatpush.msra.mxu0 0.0
    %803 = vmatpush.msra.mxu0 0.0
    %804 = vmatpush.msra.mxu0 0.0
    %805 = vmatpush.msra.mxu0 0.0
    %806 = vmatpush.msra.mxu0 0.0
    %807 = vmatpush.msra.mxu0 0.0
    %808 = vmatpush.msra.mxu0 0.0
    %809 = vmatpush.msra.mxu0 0.0
    %810 = vmatpush.msra.mxu0 0.0
    %811 = vmatpush.msra.mxu0 0.0
    %812 = vmatpush.msra.mxu0 0.0
    %813 = vmatpush.msra.mxu0 0.0
    %814 = vmatpush.msra.mxu0 0.0
    %815 = vmatpush.msra.mxu0 %v791
    %816 = vmatmul.f32.gmra.mxu0 %v792
    %v817 = vpop.f32.mrf.mxu0
    %v818 = vadd.f32 0.0, %v817
    %819 = vmatmul.f32.gmra.mxu0 %v794
    %v820 = vpop.f32.mrf.mxu0
    %v821 = vadd.f32 0.0, %v820
    %822 = vmatmul.f32.gmra.mxu0 %v796
    %v823 = vpop.f32.mrf.mxu0
    %v824 = vadd.f32 0.0, %v823
    %825 = vmatmul.f32.gmra.mxu0 %v798
    %v826 = vpop.f32.mrf.mxu0
    %v827 = vadd.f32 0.0, %v826
    %828 = vdwg.mxu0
    %v829 = vadd.f32 %v780, %v818
    %v830 = vadd.f32 %v781, %v821
    %v831 = vadd.f32 %v782, %v824
    %v832 = vadd.f32 %v783, %v827
    %v833 = vld [vmem:[%s7] sm:$0x1]
    %v835 = vperm.slane %v833, 0
    %v837 = vadd.f32 %v829, %v835
    %v838 = vadd.f32 %v830, %v835
    %v839 = vadd.f32 %v831, %v835
    %v840 = vadd.f32 %v832, %v835
    %v841 = vxor.u32 %v837, 2147483648
    %v842 = vxor.u32 %v838, 2147483648
    %v843 = vxor.u32 %v839, 2147483648
    %v844 = vxor.u32 %v840, 2147483648
    %v845 = vmul.f32 %v841, 1.442695
    %v846 = vpow.pop %v845
    %v847 = vmul.f32 %v842, 1.442695
    %v848 = vpow.pop %v847
    %v849 = vmul.f32 %v843, 1.442695
    %v850 = vpow.pop %v849
    %v851 = vmul.f32 %v844, 1.442695
    %v852 = vpow.pop %v851
    %v853 = vadd.f32 %v846, 1.0
    %v854 = vadd.f32 %v848, 1.0
    %v855 = vadd.f32 %v850, 1.0
    %v856 = vadd.f32 %v852, 1.0
    %v857 = vrcp.pop %v853
    %v858 = vmul.f32 %v853, %v857
    %v859 = vsub.f32 1.0, %v858
    %v860 = vmul.f32 %v857, %v859
    %v861 = vadd.f32 %v857, %v860
    %vm862 = vweird.f32 %v853
    %vm863 = vweird.f32 %v857
    %vm864 = vmor %vm862, %vm863
    %v865 = vsel %vm864, %v857, %v861
    %v866 = vand.u32 2147483647, %v853
    %vm867 = vcmp.eq.f32.partialorder %v866, 8.507059e+37
    %v868 = vand.u32 %v853, 2147483648
    %v869 = vor.u32 1.1754944e-38, %v868
    %v870 = vsel %vm867, %v869, %v865
    %v871 = vmul.f32 1.0, %v870
    %v872 = vrcp.pop %v854
    %v873 = vmul.f32 %v854, %v872
    %v874 = vsub.f32 1.0, %v873
    %v875 = vmul.f32 %v872, %v874
    %v876 = vadd.f32 %v872, %v875
    %vm877 = vweird.f32 %v854
    %vm878 = vweird.f32 %v872
    %vm879 = vmor %vm877, %vm878
    %v880 = vsel %vm879, %v872, %v876
    %v881 = vand.u32 2147483647, %v854
    %vm882 = vcmp.eq.f32.partialorder %v881, 8.507059e+37
    %v883 = vand.u32 %v854, 2147483648
    %v884 = vor.u32 1.1754944e-38, %v883
    %v885 = vsel %vm882, %v884, %v880
    %v886 = vmul.f32 1.0, %v885
    %v887 = vrcp.pop %v855
    %v888 = vmul.f32 %v855, %v887
    %v889 = vsub.f32 1.0, %v888
    %v890 = vmul.f32 %v887, %v889
    %v891 = vadd.f32 %v887, %v890
    %vm892 = vweird.f32 %v855
    %vm893 = vweird.f32 %v887
    %vm894 = vmor %vm892, %vm893
    %v895 = vsel %vm894, %v887, %v891
    %v896 = vand.u32 2147483647, %v855
    %vm897 = vcmp.eq.f32.partialorder %v896, 8.507059e+37
    %v898 = vand.u32 %v855, 2147483648
    %v899 = vor.u32 1.1754944e-38, %v898
    %v900 = vsel %vm897, %v899, %v895
    %v901 = vmul.f32 1.0, %v900
    %v902 = vrcp.pop %v856
    %v903 = vmul.f32 %v856, %v902
    %v904 = vsub.f32 1.0, %v903
    %v905 = vmul.f32 %v902, %v904
    %v906 = vadd.f32 %v902, %v905
    %vm907 = vweird.f32 %v856
    %vm908 = vweird.f32 %v902
    %vm909 = vmor %vm907, %vm908
    %v910 = vsel %vm909, %v902, %v906
    %v911 = vand.u32 2147483647, %v856
    %vm912 = vcmp.eq.f32.partialorder %v911, 8.507059e+37
    %v913 = vand.u32 %v856, 2147483648
    %v914 = vor.u32 1.1754944e-38, %v913
    %v915 = vsel %vm912, %v914, %v910
    %v916 = vmul.f32 1.0, %v915
    %v917 = vmul.f32 %v871, %v113
    %v918 = vmul.f32 %v886, %v114
    %v919 = vmul.f32 %v901, %v118
    %v920 = vmul.f32 %v916, %v120
    %923 = vrot.lane.b32.xlu0 %v919, 8
    %v924 = vpop.permute.xlu0 %923
    %925 = vrot.lane.b32.xlu0 %v920, 8
    %v926 = vpop.permute.xlu0 %925
    %v929 = vsel %vm373, %v917, %v924
    %v930 = vsel %vm373, %v918, %v926
    %931 = vmatpush.msra.mxu0 0.0
    %932 = vmatpush.msra.mxu0 0.0
    %933 = vmatpush.msra.mxu0 0.0
    %934 = vmatpush.msra.mxu0 0.0
    %935 = vmatpush.msra.mxu0 0.0
    %936 = vmatpush.msra.mxu0 0.0
    %937 = vmatpush.msra.mxu0 0.0
    %938 = vmatpush.msra.mxu0 0.0
    %939 = vmatpush.msra.mxu0 0.0
    %940 = vmatpush.msra.mxu0 0.0
    %941 = vmatpush.msra.mxu0 0.0
    %942 = vmatpush.msra.mxu0 0.0
    %943 = vmatpush.msra.mxu0 0.0
    %944 = vmatpush.msra.mxu0 0.0
    %945 = vmatpush.msra.mxu0 %v930
    %946 = vmatpush.msra.mxu0 %v929
    %947 = vmatmul.f32.gmra.mxu0 %v127
    %v948 = vpop.f32.mrf.mxu0
    %v949 = vadd.f32 0.0, %v948
    %950 = vmatmul.f32.gmra.mxu0 %v130
    %v951 = vpop.f32.mrf.mxu0
    %v952 = vadd.f32 0.0, %v951
    %953 = vdwg.mxu0
    %954 = vmatpush.msra.mxu0 0.0
    %955 = vmatpush.msra.mxu0 0.0
    %956 = vmatpush.msra.mxu0 0.0
    %957 = vmatpush.msra.mxu0 0.0
    %958 = vmatpush.msra.mxu0 0.0
    %959 = vmatpush.msra.mxu0 0.0
    %960 = vmatpush.msra.mxu0 0.0
    %961 = vmatpush.msra.mxu0 0.0
    %962 = vmatpush.msra.mxu0 0.0
    %963 = vmatpush.msra.mxu0 0.0
    %964 = vmatpush.msra.mxu0 0.0
    %965 = vmatpush.msra.mxu0 0.0
    %966 = vmatpush.msra.mxu0 0.0
    %967 = vmatpush.msra.mxu0 0.0
    %968 = vmatpush.msra.mxu0 %v952
    %969 = vmatpush.msra.mxu0 %v949
    %970 = vmatmul.f32.gmra.mxu0 %v127
    %v971 = vpop.f32.mrf.mxu0
    %v972 = vadd.f32 0.0, %v971
    %973 = vmatmul.f32.gmra.mxu0 %v130
    %v974 = vpop.f32.mrf.mxu0
    %v975 = vadd.f32 0.0, %v974
    %976 = vdwg.mxu0
    %v977 = vmul.f32 %v972, 2.0
    %v978 = vmul.f32 %v975, 2.0
    %v979 = vsub.f32 %v977, %v929
    %v980 = vsub.f32 %v978, %v930
    %981 = vmatpush.msra.mxu0 0.0
    %982 = vmatpush.msra.mxu0 0.0
    %983 = vmatpush.msra.mxu0 0.0
    %984 = vmatpush.msra.mxu0 0.0
    %985 = vmatpush.msra.mxu0 0.0
    %986 = vmatpush.msra.mxu0 0.0
    %987 = vmatpush.msra.mxu0 0.0
    %988 = vmatpush.msra.mxu0 0.0
    %989 = vmatpush.msra.mxu0 0.0
    %990 = vmatpush.msra.mxu0 0.0
    %991 = vmatpush.msra.mxu0 0.0
    %992 = vmatpush.msra.mxu0 0.0
    %993 = vmatpush.msra.mxu0 0.0
    %994 = vmatpush.msra.mxu0 0.0
    %995 = vmatpush.msra.mxu0 %v952
    %996 = vmatpush.msra.mxu0 %v949
    %997 = vmatmul.f32.gmra.mxu0 %v186
    %v998 = vpop.f32.mrf.mxu0
    %v999 = vadd.f32 0.0, %v998
    %1000 = vmatmul.f32.gmra.mxu0 %v189
    %v1001 = vpop.f32.mrf.mxu0
    %v1002 = vadd.f32 0.0, %v1001
    %1003 = vdwg.mxu0
    %1004 = vmatpush.msra.mxu0 0.0
    %1005 = vmatpush.msra.mxu0 0.0
    %1006 = vmatpush.msra.mxu0 0.0
    %1007 = vmatpush.msra.mxu0 0.0
    %1008 = vmatpush.msra.mxu0 0.0
    %1009 = vmatpush.msra.mxu0 0.0
    %1010 = vmatpush.msra.mxu0 0.0
    %1011 = vmatpush.msra.mxu0 0.0
    %1012 = vmatpush.msra.mxu0 0.0
    %1013 = vmatpush.msra.mxu0 0.0
    %1014 = vmatpush.msra.mxu0 0.0
    %1015 = vmatpush.msra.mxu0 0.0
    %1016 = vmatpush.msra.mxu0 0.0
    %1017 = vmatpush.msra.mxu0 0.0
    %1018 = vmatpush.msra.mxu0 %v1002
    %1019 = vmatpush.msra.mxu0 %v999
    %1020 = vmatmul.f32.gmra.mxu0 %v186
    %v1021 = vpop.f32.mrf.mxu0
    %v1022 = vadd.f32 0.0, %v1021
    %1023 = vmatmul.f32.gmra.mxu0 %v189
    %v1024 = vpop.f32.mrf.mxu0
    %v1025 = vadd.f32 0.0, %v1024
    %1026 = vdwg.mxu0
    %v1027 = vmul.f32 %v1022, 2.0
    %v1028 = vmul.f32 %v1025, 2.0
    %v1029 = vsub.f32 %v1027, %v949
    %v1030 = vsub.f32 %v1028, %v952
    %v1031 = vld [vmem:[#allocation8] sm:$0xf]
    %1034 = vrot.lane.b32.xlu0 %v929, 120
    %v1035 = vpop.permute.xlu0 %1034
    %1036 = vrot.lane.b32.xlu0 %v930, 120
    %v1037 = vpop.permute.xlu0 %1036
    %v1038 = vld [vmem:[#allocation10] sm:$0xff]
    %v1039 = vsel %vm373, %v929, 0
    %v1041 = vsel %vm373, %v930, 0
    %v1043 = vsel %vm373, %v1035, 0
    %v1045 = vsel %vm373, %v1037, 0
    %1047 = vmatpush.msra.mxu0 0.0
    %1048 = vmatpush.msra.mxu0 0.0
    %1049 = vmatpush.msra.mxu0 0.0
    %1050 = vmatpush.msra.mxu0 0.0
    %1051 = vmatpush.msra.mxu0 0.0
    %1052 = vmatpush.msra.mxu0 0.0
    %1053 = vmatpush.msra.mxu0 0.0
    %1054 = vmatpush.msra.mxu0 0.0
    %1055 = vmatpush.msra.mxu0 0.0
    %1056 = vmatpush.msra.mxu0 0.0
    %1057 = vmatpush.msra.mxu0 0.0
    %1058 = vmatpush.msra.mxu0 0.0
    %1059 = vmatpush.msra.mxu0 0.0
    %1060 = vmatpush.msra.mxu0 0.0
    %1061 = vmatpush.msra.mxu0 0.0
    %1062 = vmatpush.msra.mxu0 %v1038
    %1063 = vmatmul.f32.gmra.mxu0 %v1039
    %v1064 = vpop.f32.mrf.mxu0
    %v1065 = vadd.f32 0.0, %v1064
    %1066 = vmatmul.f32.gmra.mxu0 %v1041
    %v1067 = vpop.f32.mrf.mxu0
    %v1068 = vadd.f32 0.0, %v1067
    %1069 = vmatmul.f32.gmra.mxu0 %v1043
    %v1070 = vpop.f32.mrf.mxu0
    %v1071 = vadd.f32 0.0, %v1070
    %1072 = vmatmul.f32.gmra.mxu0 %v1045
    %v1073 = vpop.f32.mrf.mxu0
    %v1074 = vadd.f32 0.0, %v1073
    %1075 = vdwg.mxu0
    %v1077 = vsel %vm420, %v1031, 0
    %1079 = vmatpush.msra.mxu0 0.0
    %1080 = vmatpush.msra.mxu0 0.0
    %1081 = vmatpush.msra.mxu0 0.0
    %1082 = vmatpush.msra.mxu0 0.0
    %1083 = vmatpush.msra.mxu0 0.0
    %1084 = vmatpush.msra.mxu0 0.0
    %1085 = vmatpush.msra.mxu0 0.0
    %1086 = vmatpush.msra.mxu0 0.0
    %1087 = vmatpush.msra.mxu0 0.0
    %1088 = vmatpush.msra.mxu0 0.0
    %1089 = vmatpush.msra.mxu0 0.0
    %1090 = vmatpush.msra.mxu0 0.0
    %1091 = vmatpush.msra.mxu0 0.0
    %1092 = vmatpush.msra.mxu0 0.0
    %1093 = vmatpush.msra.mxu0 0.0
    %1094 = vmatpush.msra.mxu0 %v1077
    %1095 = vmatmul.f32.gmra.mxu0 %v412
    %v1096 = vpop.f32.mrf.mxu0
    %v1097 = vadd.f32 %v1065, %v1096
    %1098 = vmatmul.f32.gmra.mxu0 %v414
    %v1099 = vpop.f32.mrf.mxu0
    %v1100 = vadd.f32 %v1068, %v1099
    %1101 = vmatmul.f32.gmra.mxu0 %v416
    %v1102 = vpop.f32.mrf.mxu0
    %v1103 = vadd.f32 %v1071, %v1102
    %1104 = vmatmul.f32.gmra.mxu0 %v418
    %v1105 = vpop.f32.mrf.mxu0
    %v1106 = vadd.f32 %v1074, %v1105
    %1107 = vdwg.mxu0
    %s1108 = scalar_lea.vmem [#allocation8], 4
    %v1109 = vld [vmem:[%s1108] sm:$0xf]
    %v1111 = vsel %vm420, %v1109, 0
    %1113 = vmatpush.msra.mxu0 0.0
    %1114 = vmatpush.msra.mxu0 0.0
    %1115 = vmatpush.msra.mxu0 0.0
    %1116 = vmatpush.msra.mxu0 0.0
    %1117 = vmatpush.msra.mxu0 0.0
    %1118 = vmatpush.msra.mxu0 0.0
    %1119 = vmatpush.msra.mxu0 0.0
    %1120 = vmatpush.msra.mxu0 0.0
    %1121 = vmatpush.msra.mxu0 0.0
    %1122 = vmatpush.msra.mxu0 0.0
    %1123 = vmatpush.msra.mxu0 0.0
    %1124 = vmatpush.msra.mxu0 0.0
    %1125 = vmatpush.msra.mxu0 0.0
    %1126 = vmatpush.msra.mxu0 0.0
    %1127 = vmatpush.msra.mxu0 0.0
    %1128 = vmatpush.msra.mxu0 %v1111
    %1129 = vmatmul.f32.gmra.mxu0 %v455
    %v1130 = vpop.f32.mrf.mxu0
    %v1131 = vadd.f32 0.0, %v1130
    %1132 = vmatmul.f32.gmra.mxu0 %v457
    %v1133 = vpop.f32.mrf.mxu0
    %v1134 = vadd.f32 0.0, %v1133
    %1135 = vmatmul.f32.gmra.mxu0 %v459
    %v1136 = vpop.f32.mrf.mxu0
    %v1137 = vadd.f32 0.0, %v1136
    %1138 = vmatmul.f32.gmra.mxu0 %v461
    %v1139 = vpop.f32.mrf.mxu0
    %v1140 = vadd.f32 0.0, %v1139
    %1141 = vdwg.mxu0
    %v1142 = vadd.f32 %v1097, %v1131
    %v1143 = vadd.f32 %v1100, %v1134
    %v1144 = vadd.f32 %v1103, %v1137
    %v1145 = vadd.f32 %v1106, %v1140
    %1148 = vrot.lane.b32.xlu0 %v949, 120
    %v1149 = vpop.permute.xlu0 %1148
    %1150 = vrot.lane.b32.xlu0 %v952, 120
    %v1151 = vpop.permute.xlu0 %1150
    %s1152 = scalar_lea.vmem [#allocation10], 8
    %v1153 = vld [vmem:[%s1152] sm:$0xff]
    %v1154 = vsel %vm373, %v949, 0
    %v1156 = vsel %vm373, %v952, 0
    %v1158 = vsel %vm373, %v1149, 0
    %v1160 = vsel %vm373, %v1151, 0
    %1162 = vmatpush.msra.mxu0 0.0
    %1163 = vmatpush.msra.mxu0 0.0
    %1164 = vmatpush.msra.mxu0 0.0
    %1165 = vmatpush.msra.mxu0 0.0
    %1166 = vmatpush.msra.mxu0 0.0
    %1167 = vmatpush.msra.mxu0 0.0
    %1168 = vmatpush.msra.mxu0 0.0
    %1169 = vmatpush.msra.mxu0 0.0
    %1170 = vmatpush.msra.mxu0 0.0
    %1171 = vmatpush.msra.mxu0 0.0
    %1172 = vmatpush.msra.mxu0 0.0
    %1173 = vmatpush.msra.mxu0 0.0
    %1174 = vmatpush.msra.mxu0 0.0
    %1175 = vmatpush.msra.mxu0 0.0
    %1176 = vmatpush.msra.mxu0 0.0
    %1177 = vmatpush.msra.mxu0 %v1153
    %1178 = vmatmul.f32.gmra.mxu0 %v1154
    %v1179 = vpop.f32.mrf.mxu0
    %v1180 = vadd.f32 0.0, %v1179
    %1181 = vmatmul.f32.gmra.mxu0 %v1156
    %v1182 = vpop.f32.mrf.mxu0
    %v1183 = vadd.f32 0.0, %v1182
    %1184 = vmatmul.f32.gmra.mxu0 %v1158
    %v1185 = vpop.f32.mrf.mxu0
    %v1186 = vadd.f32 0.0, %v1185
    %1187 = vmatmul.f32.gmra.mxu0 %v1160
    %v1188 = vpop.f32.mrf.mxu0
    %v1189 = vadd.f32 0.0, %v1188
    %1190 = vdwg.mxu0
    %v1191 = vadd.f32 %v1142, %v1180
    %v1192 = vadd.f32 %v1143, %v1183
    %v1193 = vadd.f32 %v1144, %v1186
    %v1194 = vadd.f32 %v1145, %v1189
    %s1195 = scalar_lea.vmem [#allocation8], 8
    %v1196 = vld [vmem:[%s1195] sm:$0xf]
    %v1198 = vsel %vm420, %v1196, 0
    %1200 = vmatpush.msra.mxu0 0.0
    %1201 = vmatpush.msra.mxu0 0.0
    %1202 = vmatpush.msra.mxu0 0.0
    %1203 = vmatpush.msra.mxu0 0.0
    %1204 = vmatpush.msra.mxu0 0.0
    %1205 = vmatpush.msra.mxu0 0.0
    %1206 = vmatpush.msra.mxu0 0.0
    %1207 = vmatpush.msra.mxu0 0.0
    %1208 = vmatpush.msra.mxu0 0.0
    %1209 = vmatpush.msra.mxu0 0.0
    %1210 = vmatpush.msra.mxu0 0.0
    %1211 = vmatpush.msra.mxu0 0.0
    %1212 = vmatpush.msra.mxu0 0.0
    %1213 = vmatpush.msra.mxu0 0.0
    %1214 = vmatpush.msra.mxu0 0.0
    %1215 = vmatpush.msra.mxu0 %v1198
    %1216 = vmatmul.f32.gmra.mxu0 %v550
    %v1217 = vpop.f32.mrf.mxu0
    %v1218 = vadd.f32 0.0, %v1217
    %1219 = vmatmul.f32.gmra.mxu0 %v552
    %v1220 = vpop.f32.mrf.mxu0
    %v1221 = vadd.f32 0.0, %v1220
    %1222 = vmatmul.f32.gmra.mxu0 %v554
    %v1223 = vpop.f32.mrf.mxu0
    %v1224 = vadd.f32 0.0, %v1223
    %1225 = vmatmul.f32.gmra.mxu0 %v556
    %v1226 = vpop.f32.mrf.mxu0
    %v1227 = vadd.f32 0.0, %v1226
    %1228 = vdwg.mxu0
    %v1229 = vadd.f32 %v1191, %v1218
    %v1230 = vadd.f32 %v1192, %v1221
    %v1231 = vadd.f32 %v1193, %v1224
    %v1232 = vadd.f32 %v1194, %v1227
    %1235 = vrot.lane.b32.xlu0 %v979, 120
    %v1236 = vpop.permute.xlu0 %1235
    %1237 = vrot.lane.b32.xlu0 %v980, 120
    %v1238 = vpop.permute.xlu0 %1237
    %s1239 = scalar_lea.vmem [#allocation10], 16
    %v1240 = vld [vmem:[%s1239] sm:$0xff]
    %v1241 = vsel %vm373, %v979, 0
    %v1243 = vsel %vm373, %v980, 0
    %v1245 = vsel %vm373, %v1236, 0
    %v1247 = vsel %vm373, %v1238, 0
    %1249 = vmatpush.msra.mxu0 0.0
    %1250 = vmatpush.msra.mxu0 0.0
    %1251 = vmatpush.msra.mxu0 0.0
    %1252 = vmatpush.msra.mxu0 0.0
    %1253 = vmatpush.msra.mxu0 0.0
    %1254 = vmatpush.msra.mxu0 0.0
    %1255 = vmatpush.msra.mxu0 0.0
    %1256 = vmatpush.msra.mxu0 0.0
    %1257 = vmatpush.msra.mxu0 0.0
    %1258 = vmatpush.msra.mxu0 0.0
    %1259 = vmatpush.msra.mxu0 0.0
    %1260 = vmatpush.msra.mxu0 0.0
    %1261 = vmatpush.msra.mxu0 0.0
    %1262 = vmatpush.msra.mxu0 0.0
    %1263 = vmatpush.msra.mxu0 0.0
    %1264 = vmatpush.msra.mxu0 %v1240
    %1265 = vmatmul.f32.gmra.mxu0 %v1241
    %v1266 = vpop.f32.mrf.mxu0
    %v1267 = vadd.f32 0.0, %v1266
    %1268 = vmatmul.f32.gmra.mxu0 %v1243
    %v1269 = vpop.f32.mrf.mxu0
    %v1270 = vadd.f32 0.0, %v1269
    %1271 = vmatmul.f32.gmra.mxu0 %v1245
    %v1272 = vpop.f32.mrf.mxu0
    %v1273 = vadd.f32 0.0, %v1272
    %1274 = vmatmul.f32.gmra.mxu0 %v1247
    %v1275 = vpop.f32.mrf.mxu0
    %v1276 = vadd.f32 0.0, %v1275
    %1277 = vdwg.mxu0
    %v1278 = vadd.f32 %v1229, %v1267
    %v1279 = vadd.f32 %v1230, %v1270
    %v1280 = vadd.f32 %v1231, %v1273
    %v1281 = vadd.f32 %v1232, %v1276
    %s1282 = scalar_lea.vmem [#allocation8], 12
    %v1283 = vld [vmem:[%s1282] sm:$0xf]
    %v1285 = vsel %vm420, %v1283, 0
    %1287 = vmatpush.msra.mxu0 0.0
    %1288 = vmatpush.msra.mxu0 0.0
    %1289 = vmatpush.msra.mxu0 0.0
    %1290 = vmatpush.msra.mxu0 0.0
    %1291 = vmatpush.msra.mxu0 0.0
    %1292 = vmatpush.msra.mxu0 0.0
    %1293 = vmatpush.msra.mxu0 0.0
    %1294 = vmatpush.msra.mxu0 0.0
    %1295 = vmatpush.msra.mxu0 0.0
    %1296 = vmatpush.msra.mxu0 0.0
    %1297 = vmatpush.msra.mxu0 0.0
    %1298 = vmatpush.msra.mxu0 0.0
    %1299 = vmatpush.msra.mxu0 0.0
    %1300 = vmatpush.msra.mxu0 0.0
    %1301 = vmatpush.msra.mxu0 0.0
    %1302 = vmatpush.msra.mxu0 %v1285
    %1303 = vmatmul.f32.gmra.mxu0 %v645
    %v1304 = vpop.f32.mrf.mxu0
    %v1305 = vadd.f32 0.0, %v1304
    %1306 = vmatmul.f32.gmra.mxu0 %v647
    %v1307 = vpop.f32.mrf.mxu0
    %v1308 = vadd.f32 0.0, %v1307
    %1309 = vmatmul.f32.gmra.mxu0 %v649
    %v1310 = vpop.f32.mrf.mxu0
    %v1311 = vadd.f32 0.0, %v1310
    %1312 = vmatmul.f32.gmra.mxu0 %v651
    %v1313 = vpop.f32.mrf.mxu0
    %v1314 = vadd.f32 0.0, %v1313
    %1315 = vdwg.mxu0
    %v1316 = vadd.f32 %v1278, %v1305
    %v1317 = vadd.f32 %v1279, %v1308
    %v1318 = vadd.f32 %v1280, %v1311
    %v1319 = vadd.f32 %v1281, %v1314
    %1322 = vrot.lane.b32.xlu0 %v999, 120
    %v1323 = vpop.permute.xlu0 %1322
    %1324 = vrot.lane.b32.xlu0 %v1002, 120
    %v1325 = vpop.permute.xlu0 %1324
    %s1326 = scalar_lea.vmem [#allocation10], 24
    %v1327 = vld [vmem:[%s1326] sm:$0xff]
    %v1328 = vsel %vm373, %v999, 0
    %v1330 = vsel %vm373, %v1002, 0
    %v1332 = vsel %vm373, %v1323, 0
    %v1334 = vsel %vm373, %v1325, 0
    %1336 = vmatpush.msra.mxu0 0.0
    %1337 = vmatpush.msra.mxu0 0.0
    %1338 = vmatpush.msra.mxu0 0.0
    %1339 = vmatpush.msra.mxu0 0.0
    %1340 = vmatpush.msra.mxu0 0.0
    %1341 = vmatpush.msra.mxu0 0.0
    %1342 = vmatpush.msra.mxu0 0.0
    %1343 = vmatpush.msra.mxu0 0.0
    %1344 = vmatpush.msra.mxu0 0.0
    %1345 = vmatpush.msra.mxu0 0.0
    %1346 = vmatpush.msra.mxu0 0.0
    %1347 = vmatpush.msra.mxu0 0.0
    %1348 = vmatpush.msra.mxu0 0.0
    %1349 = vmatpush.msra.mxu0 0.0
    %1350 = vmatpush.msra.mxu0 0.0
    %1351 = vmatpush.msra.mxu0 %v1327
    %1352 = vmatmul.f32.gmra.mxu0 %v1328
    %v1353 = vpop.f32.mrf.mxu0
    %v1354 = vadd.f32 0.0, %v1353
    %1355 = vmatmul.f32.gmra.mxu0 %v1330
    %v1356 = vpop.f32.mrf.mxu0
    %v1357 = vadd.f32 0.0, %v1356
    %1358 = vmatmul.f32.gmra.mxu0 %v1332
    %v1359 = vpop.f32.mrf.mxu0
    %v1360 = vadd.f32 0.0, %v1359
    %1361 = vmatmul.f32.gmra.mxu0 %v1334
    %v1362 = vpop.f32.mrf.mxu0
    %v1363 = vadd.f32 0.0, %v1362
    %1364 = vdwg.mxu0
    %v1365 = vadd.f32 %v1316, %v1354
    %v1366 = vadd.f32 %v1317, %v1357
    %v1367 = vadd.f32 %v1318, %v1360
    %v1368 = vadd.f32 %v1319, %v1363
    %s1369 = scalar_lea.vmem [#allocation8], 16
    %v1370 = vld [vmem:[%s1369] sm:$0xf]
    %v1372 = vsel %vm420, %v1370, 0
    %1374 = vmatpush.msra.mxu0 0.0
    %1375 = vmatpush.msra.mxu0 0.0
    %1376 = vmatpush.msra.mxu0 0.0
    %1377 = vmatpush.msra.mxu0 0.0
    %1378 = vmatpush.msra.mxu0 0.0
    %1379 = vmatpush.msra.mxu0 0.0
    %1380 = vmatpush.msra.mxu0 0.0
    %1381 = vmatpush.msra.mxu0 0.0
    %1382 = vmatpush.msra.mxu0 0.0
    %1383 = vmatpush.msra.mxu0 0.0
    %1384 = vmatpush.msra.mxu0 0.0
    %1385 = vmatpush.msra.mxu0 0.0
    %1386 = vmatpush.msra.mxu0 0.0
    %1387 = vmatpush.msra.mxu0 0.0
    %1388 = vmatpush.msra.mxu0 0.0
    %1389 = vmatpush.msra.mxu0 %v1372
    %1390 = vmatmul.f32.gmra.mxu0 %v740
    %v1391 = vpop.f32.mrf.mxu0
    %v1392 = vadd.f32 0.0, %v1391
    %1393 = vmatmul.f32.gmra.mxu0 %v742
    %v1394 = vpop.f32.mrf.mxu0
    %v1395 = vadd.f32 0.0, %v1394
    %1396 = vmatmul.f32.gmra.mxu0 %v744
    %v1397 = vpop.f32.mrf.mxu0
    %v1398 = vadd.f32 0.0, %v1397
    %1399 = vmatmul.f32.gmra.mxu0 %v746
    %v1400 = vpop.f32.mrf.mxu0
    %v1401 = vadd.f32 0.0, %v1400
    %1402 = vdwg.mxu0
    %v1403 = vadd.f32 %v1365, %v1392
    %v1404 = vadd.f32 %v1366, %v1395
    %v1405 = vadd.f32 %v1367, %v1398
    %v1406 = vadd.f32 %v1368, %v1401
    %1409 = vrot.lane.b32.xlu0 %v1029, 120
    %v1410 = vpop.permute.xlu0 %1409
    %1411 = vrot.lane.b32.xlu0 %v1030, 120
    %v1412 = vpop.permute.xlu0 %1411
    %s1413 = scalar_lea.vmem [#allocation10], 32
    %v1414 = vld [vmem:[%s1413] sm:$0xff]
    %v1415 = vsel %vm373, %v1029, 0
    %v1417 = vsel %vm373, %v1030, 0
    %v1419 = vsel %vm373, %v1410, 0
    %v1421 = vsel %vm373, %v1412, 0
    %1423 = vmatpush.msra.mxu0 0.0
    %1424 = vmatpush.msra.mxu0 0.0
    %1425 = vmatpush.msra.mxu0 0.0
    %1426 = vmatpush.msra.mxu0 0.0
    %1427 = vmatpush.msra.mxu0 0.0
    %1428 = vmatpush.msra.mxu0 0.0
    %1429 = vmatpush.msra.mxu0 0.0
    %1430 = vmatpush.msra.mxu0 0.0
    %1431 = vmatpush.msra.mxu0 0.0
    %1432 = vmatpush.msra.mxu0 0.0
    %1433 = vmatpush.msra.mxu0 0.0
    %1434 = vmatpush.msra.mxu0 0.0
    %1435 = vmatpush.msra.mxu0 0.0
    %1436 = vmatpush.msra.mxu0 0.0
    %1437 = vmatpush.msra.mxu0 0.0
    %1438 = vmatpush.msra.mxu0 %v1414
    %1439 = vmatmul.f32.gmra.mxu0 %v1415
    %v1440 = vpop.f32.mrf.mxu0
    %v1441 = vadd.f32 0.0, %v1440
    %1442 = vmatmul.f32.gmra.mxu0 %v1417
    %v1443 = vpop.f32.mrf.mxu0
    %v1444 = vadd.f32 0.0, %v1443
    %1445 = vmatmul.f32.gmra.mxu0 %v1419
    %v1446 = vpop.f32.mrf.mxu0
    %v1447 = vadd.f32 0.0, %v1446
    %1448 = vmatmul.f32.gmra.mxu0 %v1421
    %v1449 = vpop.f32.mrf.mxu0
    %v1450 = vadd.f32 0.0, %v1449
    %1451 = vdwg.mxu0
    %v1452 = vadd.f32 %v1403, %v1441
    %v1453 = vadd.f32 %v1404, %v1444
    %v1454 = vadd.f32 %v1405, %v1447
    %v1455 = vadd.f32 %v1406, %v1450
    %v1456 = vld [vmem:[%s8] sm:$0x1]
    %v1458 = vperm.slane %v1456, 0
    %v1460 = vadd.f32 %v1452, %v1458
    %v1461 = vadd.f32 %v1453, %v1458
    %v1462 = vadd.f32 %v1454, %v1458
    %v1463 = vadd.f32 %v1455, %v1458
    %v1464 = vtanh.pop %v1460
    %v1465 = vtanh.pop %v1461
    %v1466 = vtanh.pop %v1462
    %v1467 = vtanh.pop %v1463
    %1468 = vrot.lane.b32.xlu0 %v113, 8
    %v1469 = vpop.permute.xlu0 %1468
    %1470 = vrot.lane.b32.xlu0 %v114, 8
    %v1471 = vpop.permute.xlu0 %1470
    %1472 = vrot.lane.b32.xlu0 %v118, 8
    %v1473 = vpop.permute.xlu0 %1472
    %1474 = vrot.lane.b32.xlu0 %v120, 8
    %v1475 = vpop.permute.xlu0 %1474
    %v1480 = vmul.f32 %v871, %v1469
    %v1481 = vmul.f32 %v886, %v1471
    %v1482 = vmul.f32 %v901, %v1473
    %v1483 = vmul.f32 %v916, %v1475
    %v1484 = vsub.f32 1.0, %v871
    %v1485 = vsub.f32 1.0, %v886
    %v1486 = vsub.f32 1.0, %v901
    %v1487 = vsub.f32 1.0, %v916
    %1492 = vrot.lane.b32.xlu0 %v1464, 8
    %v1493 = vpop.permute.xlu0 %1492
    %1494 = vrot.lane.b32.xlu0 %v1465, 8
    %v1495 = vpop.permute.xlu0 %1494
    %1496 = vrot.lane.b32.xlu0 %v1466, 8
    %v1497 = vpop.permute.xlu0 %1496
    %1498 = vrot.lane.b32.xlu0 %v1467, 8
    %v1499 = vpop.permute.xlu0 %1498
    %v1504 = vmul.f32 %v1484, %v1493
    %v1505 = vmul.f32 %v1485, %v1495
    %v1506 = vmul.f32 %v1486, %v1497
    %v1507 = vmul.f32 %v1487, %v1499
    %v1508 = vadd.f32 %v1480, %v1504
    %v1509 = vadd.f32 %v1481, %v1505
    %v1510 = vadd.f32 %v1482, %v1506
    %v1511 = vadd.f32 %v1483, %v1507
    %1514 = vrot.lane.b32.xlu0 %v1508, 120
    %v1515 = vpop.permute.xlu0 %1514
    %1516 = vrot.lane.b32.xlu0 %v1509, 120
    %v1517 = vpop.permute.xlu0 %1516
    %v1520 = vsel %vm373, %v1515, %v1510
    %v1521 = vsel %vm373, %v1517, %v1511
    %1522 = vst.msk [vmem:[#allocation11] sm:$0xff] %vm125, %v1520
    %1523 = vst.msk [vmem:[#allocation11 + $0x8] sm:$0xff] %vm125, %v1521
    // Predicated region
    $region58: #{tpu_custom_call.1} parent=1 // pred_check
      _
    $region59: #{tpu_custom_call.1} parent=1 // pred_check_branch
      %1525 = sbr.rel (0) target = $region61
    $region60: #{tpu_custom_call.1} parent=1 // pred_region
      %1527 = vsyncadd [#allocation4], 0
      %s1528 = sshll.u32 [#allocation11], 4
      %s1529 = int_to_ptr.vmem [resolvable:$true] %s1528
      %s1530 = sshll.u32 %s9, 4
      %s1531 = int_to_ptr.hbm [resolvable:$true] %s1530
      %1536 = dma.vmem_to_hbm [thread:$0]  %s1529, 256, %s1531, [#allocation4], 128, 128, 8
    $region61: #{tpu_custom_call.1} parent=1 // pred_fallthru
      _
    // Predicated region
    $region62: #{tpu_custom_call.1} parent=1 // pred_check
      _
    $region63: #{tpu_custom_call.1} parent=1 // pred_check_branch
      %1538 = sbr.rel (0) target = $region65
    $region64: #{tpu_custom_call.1} parent=1 // pred_region
      %1540 = dma.done [#allocation4], 256
    $region65: #{tpu_custom_call.1} parent=1 // pred_fallthru
      _
    %1541 = vsyncpa [#allocation3], 1
    %1542 = vsyncpa [#allocation6], 1
    %1543 = vsyncpa [#allocation9], 1
    %1544 = vsyncpa [#allocation4], 1

</llo_original>
